<compile_context>
chip_gen: v5e
topology: v5e:2x2
jax: 0.10.0
libtpu: 0.0.40
codegen_flags: <defaults>
</compile_context>

<pallas_src>
import functools
import math

import jax
import jax.numpy as jnp
from jax import lax
from jax.experimental import pallas as pl
from jax.experimental.pallas import tpu as pltpu


ROPE_NUMBER = 10000.0
LN_EPS = 1e-5


def _layer_norm(x, gamma, beta, eps):
    # Centered-variance form: mathematically identical to the module's
    # E[x^2]-E[x]^2 but avoids catastrophic cancellation in f32.
    mean = jnp.mean(x, axis=-1, keepdims=True)
    xc = x - mean
    var = jnp.mean(xc * xc, axis=-1, keepdims=True)
    return xc * lax.rsqrt(var + eps) * gamma + beta


def _gelu_tanh(x):
    c = math.sqrt(2.0 / math.pi)
    return 0.5 * x * (1.0 + jnp.tanh(c * (x + 0.044715 * x * x * x)))


def _transformer_block_kernel(
    # inputs
    x_ref, wqkv_ref, wo_ref, bo_ref,
    g1_ref, be1_ref, g2_ref, be2_ref,
    cos_ref, sin_ref,
    wf1_ref, bf1_ref, wf2_ref, bf2_ref,
    # outputs
    out_ref,
    *, num_heads, head_dim, eps):
    hidden = num_heads * head_dim
    half = hidden // 2
    hd_half = head_dim // 2

    x = x_ref[...].astype(jnp.float32)                      # [S, H]
    seq = x.shape[0]

    # ---- LayerNorm 1 --------------------------------------------------------
    ln1 = _layer_norm(x, g1_ref[...], be1_ref[...], eps)

    # ---- fused QKV projection: one MXU matmul [S,H] @ [H,3H], bf16->f32 -----
    # Q columns are pre-scaled by 1/sqrt(head_dim) and (with K) pre-permuted to
    # the per-head half-split layout; V keeps the original layout.
    qkv = jnp.dot(ln1.astype(jnp.bfloat16), wqkv_ref[...],
                  preferred_element_type=jnp.float32)        # [S, 3H]

    q_a = qkv[:, 0:half]
    q_b = qkv[:, half:hidden]
    k_a = qkv[:, hidden:hidden + half]
    k_b = qkv[:, hidden + half:2 * hidden]
    v = qkv[:, 2 * hidden:3 * hidden]

    # ---- RoPE: pure elementwise in the half-split layout (VPU only) ---------
    cos = cos_ref[...]                                       # [S, H/2]
    sin = sin_ref[...]
    qa = (q_a * cos - q_b * sin).astype(jnp.bfloat16)
    qb = (q_b * cos + q_a * sin).astype(jnp.bfloat16)
    ka = (k_a * cos - k_b * sin).astype(jnp.bfloat16)
    kb = (k_b * cos + k_a * sin).astype(jnp.bfloat16)
    vb = v.astype(jnp.bfloat16)

    # ---- per-head causal attention, fused with the output projection --------
    row = lax.broadcasted_iota(jnp.int32, (seq, seq), 0)
    col = lax.broadcasted_iota(jnp.int32, (seq, seq), 1)
    causal = col <= row

    attn = jnp.zeros((seq, hidden), jnp.float32)
    # TODO(synk): at production sizes this unrolled head loop becomes a grid
    # axis (or batched dot over heads) with flash-style KV tiling.
    for h in range(num_heads):
        a_lo = h * hd_half
        lo = h * head_dim
        qh_a = qa[:, a_lo:a_lo + hd_half]
        qh_b = qb[:, a_lo:a_lo + hd_half]
        kh_a = ka[:, a_lo:a_lo + hd_half]
        kh_b = kb[:, a_lo:a_lo + hd_half]
        # Q.K^T split over the two half-blocks (same sum, no concat needed).
        s = (lax.dot_general(qh_a, kh_a, (((1,), (1,)), ((), ())),
                             preferred_element_type=jnp.float32)
             + lax.dot_general(qh_b, kh_b, (((1,), (1,)), ((), ())),
                               preferred_element_type=jnp.float32))
        s = jnp.where(causal, s, jnp.float32(-1e30))
        s = s - jnp.max(s, axis=-1, keepdims=True)
        p = jnp.exp(s)
        p = p * pl.reciprocal(jnp.sum(p, axis=-1, keepdims=True), approx=True)
        oh = jnp.dot(p.astype(jnp.bfloat16), vb[:, lo:lo + head_dim],
                     preferred_element_type=jnp.float32)      # [S, hd]
        # Fold this head's output straight into the output projection and
        # accumulate in registers -> single full-lane-width result, no scratch.
        attn = attn + jnp.dot(oh.astype(jnp.bfloat16), wo_ref[h],
                              preferred_element_type=jnp.float32)
    attn = attn + bo_ref[...]

    # ---- residual 1 ----------------------------------------------------------
    r1 = x + attn

    # ---- LayerNorm 2 ---------------------------------------------------------
    ln2 = _layer_norm(r1, g2_ref[...], be2_ref[...], eps)

    # ---- feed-forward layer (stand-in dense MLP), residual -------------------
    # TODO(synk): config.forward_layer_class (MoE / LoRI) is not defined in the
    # spec; a dense 2-layer GELU MLP with zero load-balancing loss stands in.
    hmid = jnp.dot(ln2.astype(jnp.bfloat16), wf1_ref[...],
                   preferred_element_type=jnp.float32) + bf1_ref[...]
    hmid = _gelu_tanh(hmid)
    ffn = jnp.dot(hmid.astype(jnp.bfloat16), wf2_ref[...],
                  preferred_element_type=jnp.float32) + bf2_ref[...]

    out_ref[...] = (r1 + ffn).astype(out_ref.dtype)


def make_rope_tables(seq_len, num_heads, head_dim, number=ROPE_NUMBER, offset=0):
    """cos/sin tables [S, H/2] for the per-head half-split layout."""
    theta = 1.0 / number ** (jnp.arange(0, head_dim, 2, dtype=jnp.float32) / head_dim)
    pos = offset + jnp.arange(seq_len, dtype=jnp.float32)
    ang = jnp.outer(pos, theta)                               # [S, hd/2]
    cos = jnp.tile(jnp.cos(ang), (1, num_heads))              # [S, H/2]
    sin = jnp.tile(jnp.sin(ang), (1, num_heads))
    return cos, sin


def _rope_split_perm(num_heads, head_dim):
    """Column permutation: per-head interleaved (x0,x1,x2,x3,...) ->
    global half-split ([all heads' even dims | all heads' odd dims])."""
    half = head_dim // 2
    idx_even = (jnp.arange(num_heads)[:, None] * head_dim
                + 2 * jnp.arange(half)[None, :]).reshape(-1)
    idx_odd = idx_even + 1
    return jnp.concatenate([idx_even, idx_odd])


def init_params(key, hidden, num_heads, ffn_dim):
    """Torch-layout parameters ([out, in] Linear weights), deterministic."""
    ks = jax.random.split(key, 13)
    b_h = 1.0 / math.sqrt(hidden)
    b_f = 1.0 / math.sqrt(ffn_dim)
    u = lambda k, shape, b: jax.random.uniform(k, shape, jnp.float32, -b, b)
    return dict(
        wq=u(ks[0], (hidden, hidden), b_h),
        wk=u(ks[1], (hidden, hidden), b_h),
        wv=u(ks[2], (hidden, hidden), b_h),
        wo=u(ks[3], (hidden, hidden), b_h),
        bo=u(ks[4], (hidden,), b_h),
        w1=u(ks[5], (ffn_dim, hidden), b_h),
        b1=u(ks[6], (ffn_dim,), b_h),
        w2=u(ks[7], (hidden, ffn_dim), b_f),
        b2=u(ks[8], (hidden,), b_f),
        gamma1=1.0 + 0.1 * jax.random.normal(ks[9], (hidden,), jnp.float32),
        beta1=0.1 * jax.random.normal(ks[10], (hidden,), jnp.float32),
        gamma2=1.0 + 0.1 * jax.random.normal(ks[11], (hidden,), jnp.float32),
        beta2=0.1 * jax.random.normal(ks[12], (hidden,), jnp.float32),
    )


def prepare_kernel_params(p, num_heads):
    """One-time fuse + transpose + RoPE column-permute + scale-fold + bf16."""
    hidden = p["wq"].shape[0]
    head_dim = hidden // num_heads
    perm = _rope_split_perm(num_heads, head_dim)
    scale = 1.0 / math.sqrt(head_dim)
    wq_t = p["wq"].T[:, perm] * scale          # half-split layout, scale folded
    wk_t = p["wk"].T[:, perm]                  # half-split layout
    wv_t = p["wv"].T                           # original layout
    wqkv_t = jnp.concatenate([wq_t, wk_t, wv_t], axis=1)          # [H, 3H]
    wo3 = p["wo"].T.reshape(num_heads, head_dim, hidden)          # [nh, hd, H]
    return dict(
        wqkv_t=wqkv_t.astype(jnp.bfloat16),
        wo3=wo3.astype(jnp.bfloat16),
        bo=p["bo"][None, :],
        gamma1=p["gamma1"][None, :], beta1=p["beta1"][None, :],
        gamma2=p["gamma2"][None, :], beta2=p["beta2"][None, :],
        wf1_t=p["w1"].T.astype(jnp.bfloat16), bf1=p["b1"][None, :],
        wf2_t=p["w2"].T.astype(jnp.bfloat16), bf2=p["b2"][None, :],
    )


def transformer_block_forward(x, kp, cos, sin, *, num_heads):
    b, s, h = x.shape
    head_dim = h // num_heads
    f = kp["wf1_t"].shape[1]

    kernel = functools.partial(_transformer_block_kernel,
                               num_heads=num_heads, head_dim=head_dim, eps=LN_EPS)

    def full(shape):
        # Weights/tables: full-array block, constant index_map across batch
        # => DMA'd once, stays VMEM-resident for the whole grid.
        return pl.BlockSpec(shape, lambda bidx: (0,) * len(shape))

    grid_spec = pltpu.PrefetchScalarGridSpec(
        num_scalar_prefetch=0,
        grid=(b,),
        in_specs=[
            pl.BlockSpec((pl.Squeezed(), s, h), lambda bidx: (bidx, 0, 0)),  # x
            full((h, 3 * h)),               # wqkv_t (bf16)
            full((num_heads, head_dim, h)), # wo3    (bf16)
            full((1, h)),                   # bo
            full((1, h)),                   # gamma1
            full((1, h)),                   # beta1
            full((1, h)),                   # gamma2
            full((1, h)),                   # beta2
            full((s, h // 2)),              # cos
            full((s, h // 2)),              # sin
            full((h, f)),                   # ffn w1_t (bf16)
            full((1, f)),                   # ffn b1
            full((f, h)),                   # ffn w2_t (bf16)
            full((1, h)),                   # ffn b2
        ],
        out_specs=pl.BlockSpec((pl.Squeezed(), s, h), lambda bidx: (bidx, 0, 0)),
    )

    out = pl.pallas_call(
        kernel,
        out_shape=jax.ShapeDtypeStruct((b, s, h), x.dtype),
        grid_spec=grid_spec,
        compiler_params=pltpu.CompilerParams(
            dimension_semantics=("parallel",)),   # shard batch across TCs on v7x
    )(x, kp["wqkv_t"], kp["wo3"], kp["bo"],
      kp["gamma1"], kp["beta1"], kp["gamma2"], kp["beta2"],
      cos, sin,
      kp["wf1_t"], kp["bf1"], kp["wf2_t"], kp["bf2"])

    load_balancing_loss = jnp.float32(0.0)
    return out, load_balancing_loss


def reference_forward(x, p, num_heads, number=ROPE_NUMBER, eps=LN_EPS):
    """Plain-JAX f32 replica of the PyTorch TransformerBlock forward."""
    b, s, h = x.shape
    hd = h // num_heads
    prec = lax.Precision.HIGHEST

    def ln(t, g, be):
        mean = jnp.mean(t, axis=-1, keepdims=True)
        mean_x2 = jnp.mean(t * t, axis=-1, keepdims=True)
        var = mean_x2 - mean * mean
        return (t - mean) / jnp.sqrt(var + eps) * g + be

    ln1 = ln(x, p["gamma1"], p["beta1"])
    q = jnp.einsum("bsh,oh->bso", ln1, p["wq"], precision=prec).reshape(b, s, num_heads, hd)
    k = jnp.einsum("bsh,oh->bso", ln1, p["wk"], precision=prec).reshape(b, s, num_heads, hd)
    v = jnp.einsum("bsh,oh->bso", ln1, p["wv"], precision=prec).reshape(b, s, num_heads, hd)

    def rope(t):
        theta = 1.0 / number ** (jnp.arange(0, hd, 2, dtype=jnp.float32) / hd)
        pos = jnp.arange(s, dtype=jnp.float32)
        ang = jnp.outer(pos, theta).reshape(1, s, 1, hd // 2)
        c, si = jnp.cos(ang), jnp.sin(ang)
        tp = t.reshape(b, s, num_heads, hd // 2, 2)
        r0 = tp[..., 0] * c - tp[..., 1] * si
        r1 = tp[..., 0] * si + tp[..., 1] * c
        return jnp.stack([r0, r1], axis=-1).reshape(b, s, num_heads, hd)

    Q = jnp.transpose(rope(q), (0, 2, 1, 3))
    K = jnp.transpose(rope(k), (0, 2, 1, 3))
    A = jnp.einsum("bhid,bhjd->bhij", Q, K, precision=prec) / math.sqrt(hd)
    mask = jnp.triu(jnp.ones((s, s)), k=1) == 1
    A = jnp.where(mask[None, None], -jnp.inf, A)
    A = jax.nn.softmax(A, axis=-1)
    O = jnp.einsum("bhij,bjhd->bihd", A, v, precision=prec).reshape(b, s, h)
    attn = jnp.einsum("bsh,oh->bso", O, p["wo"], precision=prec) + p["bo"]
    r1 = x + attn

    ln2 = ln(r1, p["gamma2"], p["beta2"])
    hmid = _gelu_tanh(jnp.einsum("bsh,fh->bsf", ln2, p["w1"], precision=prec) + p["b1"])
    ffn = jnp.einsum("bsf,hf->bsh", hmid, p["w2"], precision=prec) + p["b2"]
    return r1 + ffn, jnp.float32(0.0)


if __name__ == "__main__":
    batch, seq, hidden, num_heads = 2, 8, 32, 4
    ffn_dim = 4 * hidden  # 128 (lane-dense FFN hidden)

    key = jax.random.PRNGKey(0)
    kx, kp_key = jax.random.split(key)
    x = jax.random.normal(kx, (batch, seq, hidden), dtype=jnp.float32)

    params = init_params(kp_key, hidden, num_heads, ffn_dim)
    kparams = prepare_kernel_params(params, num_heads)              # one-time
    cos, sin = make_rope_tables(seq, num_heads, hidden // num_heads)

    fwd = jax.jit(functools.partial(transformer_block_forward, num_heads=num_heads))
    out, lb_loss = fwd(x, kparams, cos, sin)
    jax.block_until_ready((out, lb_loss))

    ref, _ = reference_forward(x, params, num_heads)
    assert out.shape == x.shape
    max_diff = float(jnp.max(jnp.abs(out - ref)))
    # Tolerance accounts for bf16 matmul inputs (f32 accumulation) and the
    # approximate EUP reciprocal in the softmax; the reference stays full f32.
    assert jnp.allclose(out, ref, rtol=5e-2, atol=5e-2), f"max diff {max_diff}"

    print("KERNEL_OK")
</pallas_src>

<mosaic_0001>
module attributes {stable_mosaic.version = 11 : i64} {
  func.func @_transformer_block_kernel(%arg0: i32, %arg1: memref<1x8x32xf32, #tpu.memory_space<vmem>>, %arg2: memref<32x96xbf16, #tpu.memory_space<vmem>>, %arg3: memref<4x8x32xbf16, #tpu.memory_space<vmem>>, %arg4: memref<1x32xf32, #tpu.memory_space<vmem>>, %arg5: memref<1x32xf32, #tpu.memory_space<vmem>>, %arg6: memref<1x32xf32, #tpu.memory_space<vmem>>, %arg7: memref<1x32xf32, #tpu.memory_space<vmem>>, %arg8: memref<1x32xf32, #tpu.memory_space<vmem>>, %arg9: memref<8x16xf32, #tpu.memory_space<vmem>>, %arg10: memref<8x16xf32, #tpu.memory_space<vmem>>, %arg11: memref<32x128xbf16, #tpu.memory_space<vmem>>, %arg12: memref<1x128xf32, #tpu.memory_space<vmem>>, %arg13: memref<128x32xbf16, #tpu.memory_space<vmem>>, %arg14: memref<1x32xf32, #tpu.memory_space<vmem>>, %arg15: memref<1x8x32xf32, #tpu.memory_space<vmem>>) attributes {dimension_semantics = [#tpu.dimension_semantics<parallel>], iteration_bounds = array<i64: 2>, scalar_prefetch = 0 : i64, scratch_operands = 0 : i64, tpu.core_type = #tpu.core_type<tc>, window_params = [{transform_indices = @transform_0, window_bounds = array<i64: 1, 8, 32>}, {pipeline_mode = #tpu.pipeline_mode<synchronous>, transform_indices = @transform_1, window_bounds = array<i64: 32, 96>}, {pipeline_mode = #tpu.pipeline_mode<synchronous>, transform_indices = @transform_2, window_bounds = array<i64: 4, 8, 32>}, {pipeline_mode = #tpu.pipeline_mode<synchronous>, transform_indices = @transform_3, window_bounds = array<i64: 1, 32>}, {pipeline_mode = #tpu.pipeline_mode<synchronous>, transform_indices = @transform_4, window_bounds = array<i64: 1, 32>}, {pipeline_mode = #tpu.pipeline_mode<synchronous>, transform_indices = @transform_5, window_bounds = array<i64: 1, 32>}, {pipeline_mode = #tpu.pipeline_mode<synchronous>, transform_indices = @transform_6, window_bounds = array<i64: 1, 32>}, {pipeline_mode = #tpu.pipeline_mode<synchronous>, transform_indices = @transform_7, window_bounds = array<i64: 1, 32>}, {pipeline_mode = #tpu.pipeline_mode<synchronous>, transform_indices = @transform_8, window_bounds = array<i64: 8, 16>}, {pipeline_mode = #tpu.pipeline_mode<synchronous>, transform_indices = @transform_9, window_bounds = array<i64: 8, 16>}, {pipeline_mode = #tpu.pipeline_mode<synchronous>, transform_indices = @transform_10, window_bounds = array<i64: 32, 128>}, {pipeline_mode = #tpu.pipeline_mode<synchronous>, transform_indices = @transform_11, window_bounds = array<i64: 1, 128>}, {pipeline_mode = #tpu.pipeline_mode<synchronous>, transform_indices = @transform_12, window_bounds = array<i64: 128, 32>}, {pipeline_mode = #tpu.pipeline_mode<synchronous>, transform_indices = @transform_13, window_bounds = array<i64: 1, 32>}, {transform_indices = @transform_14, window_bounds = array<i64: 1, 8, 32>}]} {
    %c0 = arith.constant 0 : index
    %c0_0 = arith.constant 0 : index
    %c0_1 = arith.constant 0 : index
    %0 = vector.load %arg1[%c0, %c0_0, %c0_1] : memref<1x8x32xf32, #tpu.memory_space<vmem>>, vector<1x8x32xf32>
    %1 = vector.shape_cast %0 : vector<1x8x32xf32> to vector<8x32xf32>
    %c0_2 = arith.constant 0 : index
    %c0_3 = arith.constant 0 : index
    %2 = vector.load %arg5[%c0_2, %c0_3] : memref<1x32xf32, #tpu.memory_space<vmem>>, vector<1x32xf32>
    %c0_4 = arith.constant 0 : index
    %c0_5 = arith.constant 0 : index
    %3 = vector.load %arg6[%c0_4, %c0_5] : memref<1x32xf32, #tpu.memory_space<vmem>>, vector<1x32xf32>
    %cst = arith.constant dense<0.000000e+00> : vector<8xf32>
    %4 = vector.multi_reduction <add>, %1, %cst [1] : vector<8x32xf32> to vector<8xf32>
    %5 = vector.shape_cast %4 : vector<8xf32> to vector<8x1xf32>
    %cst_6 = arith.constant 3.200000e+01 : f32
    %6 = vector.broadcast %cst_6 : f32 to vector<8x1xf32>
    %7 = arith.divf %5, %6 : vector<8x1xf32>
    %8 = vector.broadcast %7 : vector<8x1xf32> to vector<8x32xf32>
    %9 = arith.subf %1, %8 : vector<8x32xf32>
    %10 = arith.mulf %9, %9 : vector<8x32xf32>
    %cst_7 = arith.constant dense<0.000000e+00> : vector<8xf32>
    %11 = vector.multi_reduction <add>, %10, %cst_7 [1] : vector<8x32xf32> to vector<8xf32>
    %12 = vector.shape_cast %11 : vector<8xf32> to vector<8x1xf32>
    %cst_8 = arith.constant 3.200000e+01 : f32
    %13 = vector.broadcast %cst_8 : f32 to vector<8x1xf32>
    %14 = arith.divf %12, %13 : vector<8x1xf32>
    %cst_9 = arith.constant 9.99999974E-6 : f32
    %15 = vector.broadcast %cst_9 : f32 to vector<8x1xf32>
    %16 = arith.addf %14, %15 : vector<8x1xf32>
    %17 = math.rsqrt %16 : vector<8x1xf32>
    %18 = vector.broadcast %17 : vector<8x1xf32> to vector<8x32xf32>
    %19 = arith.mulf %9, %18 : vector<8x32xf32>
    %20 = vector.broadcast %2 : vector<1x32xf32> to vector<8x32xf32>
    %21 = arith.mulf %19, %20 : vector<8x32xf32>
    %22 = vector.broadcast %3 : vector<1x32xf32> to vector<8x32xf32>
    %23 = arith.addf %21, %22 : vector<8x32xf32>
    %24 = arith.truncf %23 : vector<8x32xf32> to vector<8x32xbf16>
    %c0_10 = arith.constant 0 : index
    %c0_11 = arith.constant 0 : index
    %25 = vector.load %arg2[%c0_10, %c0_11] : memref<32x96xbf16, #tpu.memory_space<vmem>>, vector<32x96xbf16>
    %cst_12 = arith.constant dense<0.000000e+00> : vector<8x96xf32>
    %26 = tpu.matmul %24, %25, %cst_12 {dimension_numbers = #tpu.dot_dimension_numbers<[1], [0], [0], [1], [0, 0, 1, 1], [], []>} : vector<8x32xbf16>, vector<32x96xbf16>, vector<8x96xf32> -> vector<8x96xf32>
    %27 = vector.extract_strided_slice %26 {offsets = [0, 0], sizes = [8, 16], strides = [1, 1]} : vector<8x96xf32> to vector<8x16xf32>
    %28 = vector.extract_strided_slice %26 {offsets = [0, 16], sizes = [8, 16], strides = [1, 1]} : vector<8x96xf32> to vector<8x16xf32>
    %29 = vector.extract_strided_slice %26 {offsets = [0, 32], sizes = [8, 16], strides = [1, 1]} : vector<8x96xf32> to vector<8x16xf32>
    %30 = vector.extract_strided_slice %26 {offsets = [0, 48], sizes = [8, 16], strides = [1, 1]} : vector<8x96xf32> to vector<8x16xf32>
    %31 = vector.extract_strided_slice %26 {offsets = [0, 64], sizes = [8, 32], strides = [1, 1]} : vector<8x96xf32> to vector<8x32xf32>
    %c0_13 = arith.constant 0 : index
    %c0_14 = arith.constant 0 : index
    %32 = vector.load %arg9[%c0_13, %c0_14] : memref<8x16xf32, #tpu.memory_space<vmem>>, vector<8x16xf32>
    %c0_15 = arith.constant 0 : index
    %c0_16 = arith.constant 0 : index
    %33 = vector.load %arg10[%c0_15, %c0_16] : memref<8x16xf32, #tpu.memory_space<vmem>>, vector<8x16xf32>
    %34 = arith.mulf %27, %32 : vector<8x16xf32>
    %35 = arith.mulf %28, %33 : vector<8x16xf32>
    %36 = arith.subf %34, %35 : vector<8x16xf32>
    %37 = arith.truncf %36 : vector<8x16xf32> to vector<8x16xbf16>
    %38 = arith.mulf %28, %32 : vector<8x16xf32>
    %39 = arith.mulf %27, %33 : vector<8x16xf32>
    %40 = arith.addf %38, %39 : vector<8x16xf32>
    %41 = arith.truncf %40 : vector<8x16xf32> to vector<8x16xbf16>
    %42 = arith.mulf %29, %32 : vector<8x16xf32>
    %43 = arith.mulf %30, %33 : vector<8x16xf32>
    %44 = arith.subf %42, %43 : vector<8x16xf32>
    %45 = arith.truncf %44 : vector<8x16xf32> to vector<8x16xbf16>
    %46 = arith.mulf %30, %32 : vector<8x16xf32>
    %47 = arith.mulf %29, %33 : vector<8x16xf32>
    %48 = arith.addf %46, %47 : vector<8x16xf32>
    %49 = arith.truncf %48 : vector<8x16xf32> to vector<8x16xbf16>
    %50 = arith.truncf %31 : vector<8x32xf32> to vector<8x32xbf16>
    %51 = tpu.iota {dimensions = array<i32: 0>} : vector<8x8xi32>
    %52 = tpu.iota {dimensions = array<i32: 1>} : vector<8x8xi32>
    %53 = arith.cmpi sle, %52, %51 : vector<8x8xi32>
    %cst_17 = arith.constant 0.000000e+00 : f32
    %54 = vector.broadcast %cst_17 : f32 to vector<8x32xf32>
    %55 = vector.extract_strided_slice %37 {offsets = [0, 0], sizes = [8, 4], strides = [1, 1]} : vector<8x16xbf16> to vector<8x4xbf16>
    %56 = vector.extract_strided_slice %41 {offsets = [0, 0], sizes = [8, 4], strides = [1, 1]} : vector<8x16xbf16> to vector<8x4xbf16>
    %57 = vector.extract_strided_slice %45 {offsets = [0, 0], sizes = [8, 4], strides = [1, 1]} : vector<8x16xbf16> to vector<8x4xbf16>
    %58 = vector.extract_strided_slice %49 {offsets = [0, 0], sizes = [8, 4], strides = [1, 1]} : vector<8x16xbf16> to vector<8x4xbf16>
    %cst_18 = arith.constant dense<0.000000e+00> : vector<8x8xf32>
    %59 = tpu.matmul %55, %57, %cst_18 {dimension_numbers = #tpu.dot_dimension_numbers<[1], [1], [0], [0], [0, 0, 1, 0], [], []>} : vector<8x4xbf16>, vector<8x4xbf16>, vector<8x8xf32> -> vector<8x8xf32>
    %cst_19 = arith.constant dense<0.000000e+00> : vector<8x8xf32>
    %60 = tpu.matmul %56, %58, %cst_19 {dimension_numbers = #tpu.dot_dimension_numbers<[1], [1], [0], [0], [0, 0, 1, 0], [], []>} : vector<8x4xbf16>, vector<8x4xbf16>, vector<8x8xf32> -> vector<8x8xf32>
    %61 = arith.addf %59, %60 : vector<8x8xf32>
    %cst_20 = arith.constant -1.000000e+30 : f32
    %62 = vector.broadcast %cst_20 : f32 to vector<8x8xf32>
    %63 = arith.select %53, %61, %62 : vector<8x8xi1>, vector<8x8xf32>
    %cst_21 = arith.constant dense<0xFF800000> : vector<8xf32>
    %64 = vector.multi_reduction <maximumf>, %63, %cst_21 [1] : vector<8x8xf32> to vector<8xf32>
    %65 = vector.shape_cast %64 : vector<8xf32> to vector<8x1xf32>
    %66 = vector.broadcast %65 : vector<8x1xf32> to vector<8x8xf32>
    %67 = arith.subf %63, %66 : vector<8x8xf32>
    %68 = math.exp %67 : vector<8x8xf32>
    %cst_22 = arith.constant dense<0.000000e+00> : vector<8xf32>
    %69 = vector.multi_reduction <add>, %68, %cst_22 [1] : vector<8x8xf32> to vector<8xf32>
    %70 = vector.shape_cast %69 : vector<8xf32> to vector<8x1xf32>
    %71 = tpu.reciprocal %70 {approx = true} : vector<8x1xf32> -> vector<8x1xf32>
    %72 = vector.broadcast %71 : vector<8x1xf32> to vector<8x8xf32>
    %73 = arith.mulf %68, %72 : vector<8x8xf32>
    %74 = arith.truncf %73 : vector<8x8xf32> to vector<8x8xbf16>
    %75 = vector.extract_strided_slice %50 {offsets = [0, 0], sizes = [8, 8], strides = [1, 1]} : vector<8x32xbf16> to vector<8x8xbf16>
    %cst_23 = arith.constant dense<0.000000e+00> : vector<8x8xf32>
    %76 = tpu.matmul %74, %75, %cst_23 {dimension_numbers = #tpu.dot_dimension_numbers<[1], [0], [0], [1], [0, 0, 1, 1], [], []>} : vector<8x8xbf16>, vector<8x8xbf16>, vector<8x8xf32> -> vector<8x8xf32>
    %77 = arith.truncf %76 : vector<8x8xf32> to vector<8x8xbf16>
    %c0_24 = arith.constant 0 : index
    %c0_25 = arith.constant 0 : index
    %c0_26 = arith.constant 0 : index
    %78 = vector.load %arg3[%c0_24, %c0_25, %c0_26] : memref<4x8x32xbf16, #tpu.memory_space<vmem>>, vector<1x8x32xbf16>
    %79 = vector.shape_cast %78 : vector<1x8x32xbf16> to vector<8x32xbf16>
    %cst_27 = arith.constant dense<0.000000e+00> : vector<8x32xf32>
    %80 = tpu.matmul %77, %79, %cst_27 {dimension_numbers = #tpu.dot_dimension_numbers<[1], [0], [0], [1], [0, 0, 1, 1], [], []>} : vector<8x8xbf16>, vector<8x32xbf16>, vector<8x32xf32> -> vector<8x32xf32>
    %81 = arith.addf %54, %80 : vector<8x32xf32>
    %82 = vector.extract_strided_slice %37 {offsets = [0, 4], sizes = [8, 4], strides = [1, 1]} : vector<8x16xbf16> to vector<8x4xbf16>
    %83 = vector.extract_strided_slice %41 {offsets = [0, 4], sizes = [8, 4], strides = [1, 1]} : vector<8x16xbf16> to vector<8x4xbf16>
    %84 = vector.extract_strided_slice %45 {offsets = [0, 4], sizes = [8, 4], strides = [1, 1]} : vector<8x16xbf16> to vector<8x4xbf16>
    %85 = vector.extract_strided_slice %49 {offsets = [0, 4], sizes = [8, 4], strides = [1, 1]} : vector<8x16xbf16> to vector<8x4xbf16>
    %cst_28 = arith.constant dense<0.000000e+00> : vector<8x8xf32>
    %86 = tpu.matmul %82, %84, %cst_28 {dimension_numbers = #tpu.dot_dimension_numbers<[1], [1], [0], [0], [0, 0, 1, 0], [], []>} : vector<8x4xbf16>, vector<8x4xbf16>, vector<8x8xf32> -> vector<8x8xf32>
    %cst_29 = arith.constant dense<0.000000e+00> : vector<8x8xf32>
    %87 = tpu.matmul %83, %85, %cst_29 {dimension_numbers = #tpu.dot_dimension_numbers<[1], [1], [0], [0], [0, 0, 1, 0], [], []>} : vector<8x4xbf16>, vector<8x4xbf16>, vector<8x8xf32> -> vector<8x8xf32>
    %88 = arith.addf %86, %87 : vector<8x8xf32>
    %cst_30 = arith.constant -1.000000e+30 : f32
    %89 = vector.broadcast %cst_30 : f32 to vector<8x8xf32>
    %90 = arith.select %53, %88, %89 : vector<8x8xi1>, vector<8x8xf32>
    %cst_31 = arith.constant dense<0xFF800000> : vector<8xf32>
    %91 = vector.multi_reduction <maximumf>, %90, %cst_31 [1] : vector<8x8xf32> to vector<8xf32>
    %92 = vector.shape_cast %91 : vector<8xf32> to vector<8x1xf32>
    %93 = vector.broadcast %92 : vector<8x1xf32> to vector<8x8xf32>
    %94 = arith.subf %90, %93 : vector<8x8xf32>
    %95 = math.exp %94 : vector<8x8xf32>
    %cst_32 = arith.constant dense<0.000000e+00> : vector<8xf32>
    %96 = vector.multi_reduction <add>, %95, %cst_32 [1] : vector<8x8xf32> to vector<8xf32>
    %97 = vector.shape_cast %96 : vector<8xf32> to vector<8x1xf32>
    %98 = tpu.reciprocal %97 {approx = true} : vector<8x1xf32> -> vector<8x1xf32>
    %99 = vector.broadcast %98 : vector<8x1xf32> to vector<8x8xf32>
    %100 = arith.mulf %95, %99 : vector<8x8xf32>
    %101 = arith.truncf %100 : vector<8x8xf32> to vector<8x8xbf16>
    %102 = vector.extract_strided_slice %50 {offsets = [0, 8], sizes = [8, 8], strides = [1, 1]} : vector<8x32xbf16> to vector<8x8xbf16>
    %cst_33 = arith.constant dense<0.000000e+00> : vector<8x8xf32>
    %103 = tpu.matmul %101, %102, %cst_33 {dimension_numbers = #tpu.dot_dimension_numbers<[1], [0], [0], [1], [0, 0, 1, 1], [], []>} : vector<8x8xbf16>, vector<8x8xbf16>, vector<8x8xf32> -> vector<8x8xf32>
    %104 = arith.truncf %103 : vector<8x8xf32> to vector<8x8xbf16>
    %c1 = arith.constant 1 : index
    %c0_34 = arith.constant 0 : index
    %c0_35 = arith.constant 0 : index
    %105 = vector.load %arg3[%c1, %c0_34, %c0_35] : memref<4x8x32xbf16, #tpu.memory_space<vmem>>, vector<1x8x32xbf16>
    %106 = vector.shape_cast %105 : vector<1x8x32xbf16> to vector<8x32xbf16>
    %cst_36 = arith.constant dense<0.000000e+00> : vector<8x32xf32>
    %107 = tpu.matmul %104, %106, %cst_36 {dimension_numbers = #tpu.dot_dimension_numbers<[1], [0], [0], [1], [0, 0, 1, 1], [], []>} : vector<8x8xbf16>, vector<8x32xbf16>, vector<8x32xf32> -> vector<8x32xf32>
    %108 = arith.addf %81, %107 : vector<8x32xf32>
    %109 = vector.extract_strided_slice %37 {offsets = [0, 8], sizes = [8, 4], strides = [1, 1]} : vector<8x16xbf16> to vector<8x4xbf16>
    %110 = vector.extract_strided_slice %41 {offsets = [0, 8], sizes = [8, 4], strides = [1, 1]} : vector<8x16xbf16> to vector<8x4xbf16>
    %111 = vector.extract_strided_slice %45 {offsets = [0, 8], sizes = [8, 4], strides = [1, 1]} : vector<8x16xbf16> to vector<8x4xbf16>
    %112 = vector.extract_strided_slice %49 {offsets = [0, 8], sizes = [8, 4], strides = [1, 1]} : vector<8x16xbf16> to vector<8x4xbf16>
    %cst_37 = arith.constant dense<0.000000e+00> : vector<8x8xf32>
    %113 = tpu.matmul %109, %111, %cst_37 {dimension_numbers = #tpu.dot_dimension_numbers<[1], [1], [0], [0], [0, 0, 1, 0], [], []>} : vector<8x4xbf16>, vector<8x4xbf16>, vector<8x8xf32> -> vector<8x8xf32>
    %cst_38 = arith.constant dense<0.000000e+00> : vector<8x8xf32>
    %114 = tpu.matmul %110, %112, %cst_38 {dimension_numbers = #tpu.dot_dimension_numbers<[1], [1], [0], [0], [0, 0, 1, 0], [], []>} : vector<8x4xbf16>, vector<8x4xbf16>, vector<8x8xf32> -> vector<8x8xf32>
    %115 = arith.addf %113, %114 : vector<8x8xf32>
    %cst_39 = arith.constant -1.000000e+30 : f32
    %116 = vector.broadcast %cst_39 : f32 to vector<8x8xf32>
    %117 = arith.select %53, %115, %116 : vector<8x8xi1>, vector<8x8xf32>
    %cst_40 = arith.constant dense<0xFF800000> : vector<8xf32>
    %118 = vector.multi_reduction <maximumf>, %117, %cst_40 [1] : vector<8x8xf32> to vector<8xf32>
    %119 = vector.shape_cast %118 : vector<8xf32> to vector<8x1xf32>
    %120 = vector.broadcast %119 : vector<8x1xf32> to vector<8x8xf32>
    %121 = arith.subf %117, %120 : vector<8x8xf32>
    %122 = math.exp %121 : vector<8x8xf32>
    %cst_41 = arith.constant dense<0.000000e+00> : vector<8xf32>
    %123 = vector.multi_reduction <add>, %122, %cst_41 [1] : vector<8x8xf32> to vector<8xf32>
    %124 = vector.shape_cast %123 : vector<8xf32> to vector<8x1xf32>
    %125 = tpu.reciprocal %124 {approx = true} : vector<8x1xf32> -> vector<8x1xf32>
    %126 = vector.broadcast %125 : vector<8x1xf32> to vector<8x8xf32>
    %127 = arith.mulf %122, %126 : vector<8x8xf32>
    %128 = arith.truncf %127 : vector<8x8xf32> to vector<8x8xbf16>
    %129 = vector.extract_strided_slice %50 {offsets = [0, 16], sizes = [8, 8], strides = [1, 1]} : vector<8x32xbf16> to vector<8x8xbf16>
    %cst_42 = arith.constant dense<0.000000e+00> : vector<8x8xf32>
    %130 = tpu.matmul %128, %129, %cst_42 {dimension_numbers = #tpu.dot_dimension_numbers<[1], [0], [0], [1], [0, 0, 1, 1], [], []>} : vector<8x8xbf16>, vector<8x8xbf16>, vector<8x8xf32> -> vector<8x8xf32>
    %131 = arith.truncf %130 : vector<8x8xf32> to vector<8x8xbf16>
    %c2 = arith.constant 2 : index
    %c0_43 = arith.constant 0 : index
    %c0_44 = arith.constant 0 : index
    %132 = vector.load %arg3[%c2, %c0_43, %c0_44] : memref<4x8x32xbf16, #tpu.memory_space<vmem>>, vector<1x8x32xbf16>
    %133 = vector.shape_cast %132 : vector<1x8x32xbf16> to vector<8x32xbf16>
    %cst_45 = arith.constant dense<0.000000e+00> : vector<8x32xf32>
    %134 = tpu.matmul %131, %133, %cst_45 {dimension_numbers = #tpu.dot_dimension_numbers<[1], [0], [0], [1], [0, 0, 1, 1], [], []>} : vector<8x8xbf16>, vector<8x32xbf16>, vector<8x32xf32> -> vector<8x32xf32>
    %135 = arith.addf %108, %134 : vector<8x32xf32>
    %136 = vector.extract_strided_slice %37 {offsets = [0, 12], sizes = [8, 4], strides = [1, 1]} : vector<8x16xbf16> to vector<8x4xbf16>
    %137 = vector.extract_strided_slice %41 {offsets = [0, 12], sizes = [8, 4], strides = [1, 1]} : vector<8x16xbf16> to vector<8x4xbf16>
    %138 = vector.extract_strided_slice %45 {offsets = [0, 12], sizes = [8, 4], strides = [1, 1]} : vector<8x16xbf16> to vector<8x4xbf16>
    %139 = vector.extract_strided_slice %49 {offsets = [0, 12], sizes = [8, 4], strides = [1, 1]} : vector<8x16xbf16> to vector<8x4xbf16>
    %cst_46 = arith.constant dense<0.000000e+00> : vector<8x8xf32>
    %140 = tpu.matmul %136, %138, %cst_46 {dimension_numbers = #tpu.dot_dimension_numbers<[1], [1], [0], [0], [0, 0, 1, 0], [], []>} : vector<8x4xbf16>, vector<8x4xbf16>, vector<8x8xf32> -> vector<8x8xf32>
    %cst_47 = arith.constant dense<0.000000e+00> : vector<8x8xf32>
    %141 = tpu.matmul %137, %139, %cst_47 {dimension_numbers = #tpu.dot_dimension_numbers<[1], [1], [0], [0], [0, 0, 1, 0], [], []>} : vector<8x4xbf16>, vector<8x4xbf16>, vector<8x8xf32> -> vector<8x8xf32>
    %142 = arith.addf %140, %141 : vector<8x8xf32>
    %cst_48 = arith.constant -1.000000e+30 : f32
    %143 = vector.broadcast %cst_48 : f32 to vector<8x8xf32>
    %144 = arith.select %53, %142, %143 : vector<8x8xi1>, vector<8x8xf32>
    %cst_49 = arith.constant dense<0xFF800000> : vector<8xf32>
    %145 = vector.multi_reduction <maximumf>, %144, %cst_49 [1] : vector<8x8xf32> to vector<8xf32>
    %146 = vector.shape_cast %145 : vector<8xf32> to vector<8x1xf32>
    %147 = vector.broadcast %146 : vector<8x1xf32> to vector<8x8xf32>
    %148 = arith.subf %144, %147 : vector<8x8xf32>
    %149 = math.exp %148 : vector<8x8xf32>
    %cst_50 = arith.constant dense<0.000000e+00> : vector<8xf32>
    %150 = vector.multi_reduction <add>, %149, %cst_50 [1] : vector<8x8xf32> to vector<8xf32>
    %151 = vector.shape_cast %150 : vector<8xf32> to vector<8x1xf32>
    %152 = tpu.reciprocal %151 {approx = true} : vector<8x1xf32> -> vector<8x1xf32>
    %153 = vector.broadcast %152 : vector<8x1xf32> to vector<8x8xf32>
    %154 = arith.mulf %149, %153 : vector<8x8xf32>
    %155 = arith.truncf %154 : vector<8x8xf32> to vector<8x8xbf16>
    %156 = vector.extract_strided_slice %50 {offsets = [0, 24], sizes = [8, 8], strides = [1, 1]} : vector<8x32xbf16> to vector<8x8xbf16>
    %cst_51 = arith.constant dense<0.000000e+00> : vector<8x8xf32>
    %157 = tpu.matmul %155, %156, %cst_51 {dimension_numbers = #tpu.dot_dimension_numbers<[1], [0], [0], [1], [0, 0, 1, 1], [], []>} : vector<8x8xbf16>, vector<8x8xbf16>, vector<8x8xf32> -> vector<8x8xf32>
    %158 = arith.truncf %157 : vector<8x8xf32> to vector<8x8xbf16>
    %c3 = arith.constant 3 : index
    %c0_52 = arith.constant 0 : index
    %c0_53 = arith.constant 0 : index
    %159 = vector.load %arg3[%c3, %c0_52, %c0_53] : memref<4x8x32xbf16, #tpu.memory_space<vmem>>, vector<1x8x32xbf16>
    %160 = vector.shape_cast %159 : vector<1x8x32xbf16> to vector<8x32xbf16>
    %cst_54 = arith.constant dense<0.000000e+00> : vector<8x32xf32>
    %161 = tpu.matmul %158, %160, %cst_54 {dimension_numbers = #tpu.dot_dimension_numbers<[1], [0], [0], [1], [0, 0, 1, 1], [], []>} : vector<8x8xbf16>, vector<8x32xbf16>, vector<8x32xf32> -> vector<8x32xf32>
    %162 = arith.addf %135, %161 : vector<8x32xf32>
    %c0_55 = arith.constant 0 : index
    %c0_56 = arith.constant 0 : index
    %163 = vector.load %arg4[%c0_55, %c0_56] : memref<1x32xf32, #tpu.memory_space<vmem>>, vector<1x32xf32>
    %164 = vector.broadcast %163 : vector<1x32xf32> to vector<8x32xf32>
    %165 = arith.addf %162, %164 : vector<8x32xf32>
    %166 = arith.addf %1, %165 : vector<8x32xf32>
    %c0_57 = arith.constant 0 : index
    %c0_58 = arith.constant 0 : index
    %167 = vector.load %arg7[%c0_57, %c0_58] : memref<1x32xf32, #tpu.memory_space<vmem>>, vector<1x32xf32>
    %c0_59 = arith.constant 0 : index
    %c0_60 = arith.constant 0 : index
    %168 = vector.load %arg8[%c0_59, %c0_60] : memref<1x32xf32, #tpu.memory_space<vmem>>, vector<1x32xf32>
    %cst_61 = arith.constant dense<0.000000e+00> : vector<8xf32>
    %169 = vector.multi_reduction <add>, %166, %cst_61 [1] : vector<8x32xf32> to vector<8xf32>
    %170 = vector.shape_cast %169 : vector<8xf32> to vector<8x1xf32>
    %cst_62 = arith.constant 3.200000e+01 : f32
    %171 = vector.broadcast %cst_62 : f32 to vector<8x1xf32>
    %172 = arith.divf %170, %171 : vector<8x1xf32>
    %173 = vector.broadcast %172 : vector<8x1xf32> to vector<8x32xf32>
    %174 = arith.subf %166, %173 : vector<8x32xf32>
    %175 = arith.mulf %174, %174 : vector<8x32xf32>
    %cst_63 = arith.constant dense<0.000000e+00> : vector<8xf32>
    %176 = vector.multi_reduction <add>, %175, %cst_63 [1] : vector<8x32xf32> to vector<8xf32>
    %177 = vector.shape_cast %176 : vector<8xf32> to vector<8x1xf32>
    %cst_64 = arith.constant 3.200000e+01 : f32
    %178 = vector.broadcast %cst_64 : f32 to vector<8x1xf32>
    %179 = arith.divf %177, %178 : vector<8x1xf32>
    %cst_65 = arith.constant 9.99999974E-6 : f32
    %180 = vector.broadcast %cst_65 : f32 to vector<8x1xf32>
    %181 = arith.addf %179, %180 : vector<8x1xf32>
    %182 = math.rsqrt %181 : vector<8x1xf32>
    %183 = vector.broadcast %182 : vector<8x1xf32> to vector<8x32xf32>
    %184 = arith.mulf %174, %183 : vector<8x32xf32>
    %185 = vector.broadcast %167 : vector<1x32xf32> to vector<8x32xf32>
    %186 = arith.mulf %184, %185 : vector<8x32xf32>
    %187 = vector.broadcast %168 : vector<1x32xf32> to vector<8x32xf32>
    %188 = arith.addf %186, %187 : vector<8x32xf32>
    %189 = arith.truncf %188 : vector<8x32xf32> to vector<8x32xbf16>
    %c0_66 = arith.constant 0 : index
    %c0_67 = arith.constant 0 : index
    %190 = vector.load %arg11[%c0_66, %c0_67] : memref<32x128xbf16, #tpu.memory_space<vmem>>, vector<32x128xbf16>
    %cst_68 = arith.constant dense<0.000000e+00> : vector<8x128xf32>
    %191 = tpu.matmul %189, %190, %cst_68 {dimension_numbers = #tpu.dot_dimension_numbers<[1], [0], [0], [1], [0, 0, 1, 1], [], []>} : vector<8x32xbf16>, vector<32x128xbf16>, vector<8x128xf32> -> vector<8x128xf32>
    %c0_69 = arith.constant 0 : index
    %c0_70 = arith.constant 0 : index
    %192 = vector.load %arg12[%c0_69, %c0_70] : memref<1x128xf32, #tpu.memory_space<vmem>>, vector<1x128xf32>
    %193 = vector.broadcast %192 : vector<1x128xf32> to vector<8x128xf32>
    %194 = arith.addf %191, %193 : vector<8x128xf32>
    %cst_71 = arith.constant 5.000000e-01 : f32
    %195 = vector.broadcast %cst_71 : f32 to vector<8x128xf32>
    %196 = arith.mulf %195, %194 : vector<8x128xf32>
    %cst_72 = arith.constant 4.471500e-02 : f32
    %197 = vector.broadcast %cst_72 : f32 to vector<8x128xf32>
    %198 = arith.mulf %197, %194 : vector<8x128xf32>
    %199 = arith.mulf %198, %194 : vector<8x128xf32>
    %200 = arith.mulf %199, %194 : vector<8x128xf32>
    %201 = arith.addf %194, %200 : vector<8x128xf32>
    %cst_73 = arith.constant 0.797884583 : f32
    %202 = vector.broadcast %cst_73 : f32 to vector<8x128xf32>
    %203 = arith.mulf %202, %201 : vector<8x128xf32>
    %204 = math.tanh %203 : vector<8x128xf32>
    %cst_74 = arith.constant 1.000000e+00 : f32
    %205 = vector.broadcast %cst_74 : f32 to vector<8x128xf32>
    %206 = arith.addf %205, %204 : vector<8x128xf32>
    %207 = arith.mulf %196, %206 : vector<8x128xf32>
    %208 = arith.truncf %207 : vector<8x128xf32> to vector<8x128xbf16>
    %c0_75 = arith.constant 0 : index
    %c0_76 = arith.constant 0 : index
    %209 = vector.load %arg13[%c0_75, %c0_76] : memref<128x32xbf16, #tpu.memory_space<vmem>>, vector<128x32xbf16>
    %cst_77 = arith.constant dense<0.000000e+00> : vector<8x32xf32>
    %210 = tpu.matmul %208, %209, %cst_77 {dimension_numbers = #tpu.dot_dimension_numbers<[1], [0], [0], [1], [0, 0, 1, 1], [], []>} : vector<8x128xbf16>, vector<128x32xbf16>, vector<8x32xf32> -> vector<8x32xf32>
    %c0_78 = arith.constant 0 : index
    %c0_79 = arith.constant 0 : index
    %211 = vector.load %arg14[%c0_78, %c0_79] : memref<1x32xf32, #tpu.memory_space<vmem>>, vector<1x32xf32>
    %212 = vector.broadcast %211 : vector<1x32xf32> to vector<8x32xf32>
    %213 = arith.addf %210, %212 : vector<8x32xf32>
    %214 = arith.addf %166, %213 : vector<8x32xf32>
    %c0_80 = arith.constant 0 : index
    %c0_81 = arith.constant 0 : index
    %c0_82 = arith.constant 0 : index
    %215 = vector.load %arg15[%c0_80, %c0_81, %c0_82] : memref<1x8x32xf32, #tpu.memory_space<vmem>>, vector<1x8x32xf32>
    %216 = vector.shape_cast %215 : vector<1x8x32xf32> to vector<8x32xf32>
    %217 = vector.shape_cast %214 : vector<8x32xf32> to vector<1x8x32xf32>
    tpu.vector_store %arg15[%c0_80, %c0_81, %c0_82], %217 {strides = array<i32>} : memref<1x8x32xf32, #tpu.memory_space<vmem>>, vector<1x8x32xf32>,
    return
  }
  func.func @transform_0(%arg0: i32) -> (i32, i32, i32) {
    %c0_i32 = arith.constant 0 : i32
    %c0_i32_0 = arith.constant 0 : i32
    %c0_i32_1 = arith.constant 0 : i32
    return %arg0, %c0_i32, %c0_i32_0 : i32, i32, i32
  }
  func.func @transform_1(%arg0: i32) -> (i32, i32) {
    %c0_i32 = arith.constant 0 : i32
    %c0_i32_0 = arith.constant 0 : i32
    %c0_i32_1 = arith.constant 0 : i32
    return %c0_i32, %c0_i32_0 : i32, i32
  }
  func.func @transform_2(%arg0: i32) -> (i32, i32, i32) {
    %c0_i32 = arith.constant 0 : i32
    %c0_i32_0 = arith.constant 0 : i32
    %c0_i32_1 = arith.constant 0 : i32
    %c0_i32_2 = arith.constant 0 : i32
    return %c0_i32, %c0_i32_0, %c0_i32_1 : i32, i32, i32
  }
  func.func @transform_3(%arg0: i32) -> (i32, i32) {
    %c0_i32 = arith.constant 0 : i32
    %c0_i32_0 = arith.constant 0 : i32
    %c0_i32_1 = arith.constant 0 : i32
    return %c0_i32, %c0_i32_0 : i32, i32
  }
  func.func @transform_4(%arg0: i32) -> (i32, i32) {
    %c0_i32 = arith.constant 0 : i32
    %c0_i32_0 = arith.constant 0 : i32
    %c0_i32_1 = arith.constant 0 : i32
    return %c0_i32, %c0_i32_0 : i32, i32
  }
  func.func @transform_5(%arg0: i32) -> (i32, i32) {
    %c0_i32 = arith.constant 0 : i32
    %c0_i32_0 = arith.constant 0 : i32
    %c0_i32_1 = arith.constant 0 : i32
    return %c0_i32, %c0_i32_0 : i32, i32
  }
  func.func @transform_6(%arg0: i32) -> (i32, i32) {
    %c0_i32 = arith.constant 0 : i32
    %c0_i32_0 = arith.constant 0 : i32
    %c0_i32_1 = arith.constant 0 : i32
    return %c0_i32, %c0_i32_0 : i32, i32
  }
  func.func @transform_7(%arg0: i32) -> (i32, i32) {
    %c0_i32 = arith.constant 0 : i32
    %c0_i32_0 = arith.constant 0 : i32
    %c0_i32_1 = arith.constant 0 : i32
    return %c0_i32, %c0_i32_0 : i32, i32
  }
  func.func @transform_8(%arg0: i32) -> (i32, i32) {
    %c0_i32 = arith.constant 0 : i32
    %c0_i32_0 = arith.constant 0 : i32
    %c0_i32_1 = arith.constant 0 : i32
    return %c0_i32, %c0_i32_0 : i32, i32
  }
  func.func @transform_9(%arg0: i32) -> (i32, i32) {
    %c0_i32 = arith.constant 0 : i32
    %c0_i32_0 = arith.constant 0 : i32
    %c0_i32_1 = arith.constant 0 : i32
    return %c0_i32, %c0_i32_0 : i32, i32
  }
  func.func @transform_10(%arg0: i32) -> (i32, i32) {
    %c0_i32 = arith.constant 0 : i32
    %c0_i32_0 = arith.constant 0 : i32
    %c0_i32_1 = arith.constant 0 : i32
    return %c0_i32, %c0_i32_0 : i32, i32
  }
  func.func @transform_11(%arg0: i32) -> (i32, i32) {
    %c0_i32 = arith.constant 0 : i32
    %c0_i32_0 = arith.constant 0 : i32
    %c0_i32_1 = arith.constant 0 : i32
    return %c0_i32, %c0_i32_0 : i32, i32
  }
  func.func @transform_12(%arg0: i32) -> (i32, i32) {
    %c0_i32 = arith.constant 0 : i32
    %c0_i32_0 = arith.constant 0 : i32
    %c0_i32_1 = arith.constant 0 : i32
    return %c0_i32, %c0_i32_0 : i32, i32
  }
  func.func @transform_13(%arg0: i32) -> (i32, i32) {
    %c0_i32 = arith.constant 0 : i32
    %c0_i32_0 = arith.constant 0 : i32
    %c0_i32_1 = arith.constant 0 : i32
    return %c0_i32, %c0_i32_0 : i32, i32
  }
  func.func @transform_14(%arg0: i32) -> (i32, i32, i32) {
    %c0_i32 = arith.constant 0 : i32
    %c0_i32_0 = arith.constant 0 : i32
    %c0_i32_1 = arith.constant 0 : i32
    return %arg0, %c0_i32, %c0_i32_0 : i32, i32, i32
  }
}

</mosaic_0001>

<llo_original>
// kernel: transformer_block_forward.1
$region0: #{transformer_block_forward.1}
  #allocation0 [shape = 'u32[]', space=smem, size = 0x4, offset = 0x4, fixed_abs, tag = 'smem constant byte address 0x4 - core index']
  #allocation1 [shape = 'u32[72,128]{1,0:T(1,128)}', space=vmem, size = 0x9000, scoped, tag = 'internal scratch']
  %s0 = inlined_call_operand.vmem [shape: f32[2,8,32], index: 0, kind: input, shape index: {}]
  %s1 = inlined_call_operand.vmem [shape: bf16[32,96], index: 1, kind: input, shape index: {}]
  %s2 = inlined_call_operand.vmem [shape: bf16[4,8,32], index: 2, kind: input, shape index: {}]
  %s3 = inlined_call_operand.vmem [shape: f32[1,32], index: 3, kind: input, shape index: {}]
  %s4 = inlined_call_operand.vmem [shape: f32[1,32], index: 4, kind: input, shape index: {}]
  %s5 = inlined_call_operand.vmem [shape: f32[1,32], index: 5, kind: input, shape index: {}]
  %s6 = inlined_call_operand.vmem [shape: f32[1,32], index: 6, kind: input, shape index: {}]
  %s7 = inlined_call_operand.vmem [shape: f32[1,32], index: 7, kind: input, shape index: {}]
  %s8 = inlined_call_operand.vmem [shape: f32[8,16], index: 8, kind: input, shape index: {}]
  %s9 = inlined_call_operand.vmem [shape: f32[8,16], index: 9, kind: input, shape index: {}]
  %s10 = inlined_call_operand.vmem [shape: bf16[32,128], index: 10, kind: input, shape index: {}]
  %s11 = inlined_call_operand.vmem [shape: f32[1,128], index: 11, kind: input, shape index: {}]
  %s12 = inlined_call_operand.vmem [shape: bf16[128,32], index: 12, kind: input, shape index: {}]
  %s13 = inlined_call_operand.vmem [shape: f32[1,32], index: 13, kind: input, shape index: {}]
  %s14 = inlined_call_operand.hbm [shape: f32[2,8,32], index: 14, kind: output, shape index: {}]
  %s15 = sld [smem:[#allocation0]]
  $region89: #{transformer_block_forward.1} parent=0
    _
  %s17 = ssub.s32 1, %s15
  %s18 = scalar_select 0, %s17, %s15
  $region1: #{transformer_block_forward.1} parent=0
    #allocation2 [shape = 'u8[8192]{0}', space=vmem, size = 0x2000, scoped, tag = 'output window, operand 0']
    #allocation3 [shape = 's32[2]{0}', space=sflag, size = 0x8, scoped, tag = 'scoped memory for transformer_block_forward.1']
    %19 = vsyncpa [#allocation3], 0
    %s20 = scalar_lea.sflag [#allocation3], 1
    %21 = vsyncpa %s20, 0
    loop: start=0, step=1, limit=4
    $region2: #{transformer_block_forward.1} parent=1 // loop_pre_header
      _
    $region3: #{transformer_block_forward.1} parent=1 // loop_header
      %s23 = sphi 0, %s27
      %p24 = scmp.ge.s32.totalorder %s23, 4
      %s33 = sphi 0, %s35
      %s36 = sphi 0, %s33
      %s37 = sphi 0, %s36
      %s53 = sphi 0, %s37
      %s57 = sphi 0, %s57
      %s59 = sphi 0, %s57
      %s60 = sphi 0, %s59
      %s74 = sphi 0, %s60
      %s78 = sphi 0, %s78
      %s80 = sphi 0, %s78
      %s81 = sphi 0, %s80
      %s95 = sphi 0, %s81
      %s99 = sphi 0, %s99
      %s101 = sphi 0, %s99
      %s102 = sphi 0, %s101
      %s116 = sphi 0, %s102
      %s120 = sphi 0, %s120
      %s122 = sphi 0, %s120
      %s123 = sphi 0, %s122
      %s137 = sphi 0, %s123
      %s141 = sphi 0, %s141
      %s143 = sphi 0, %s141
      %s144 = sphi 0, %s143
      %s158 = sphi 0, %s144
      %s162 = sphi 0, %s162
      %s164 = sphi 0, %s162
      %s165 = sphi 0, %s164
      %s179 = sphi 0, %s165
      %s183 = sphi 0, %s183
      %s185 = sphi 0, %s183
      %s186 = sphi 0, %s185
      %s200 = sphi 0, %s186
      %s204 = sphi 0, %s204
      %s206 = sphi 0, %s204
      %s207 = sphi 0, %s206
      %s221 = sphi 0, %s207
      %s225 = sphi 0, %s225
      %s227 = sphi 0, %s225
      %s228 = sphi 0, %s227
      %s242 = sphi 0, %s228
      %s246 = sphi 0, %s246
      %s248 = sphi 0, %s246
      %s249 = sphi 0, %s248
      %s263 = sphi 0, %s249
      %s267 = sphi 0, %s267
      %s269 = sphi 0, %s267
      %s270 = sphi 0, %s269
      %s284 = sphi 0, %s270
      %s288 = sphi 0, %s288
      %s290 = sphi 0, %s288
      %s291 = sphi 0, %s290
      %s305 = sphi 0, %s291
      %s309 = sphi 0, %s309
      %s311 = sphi 0, %s309
      %s312 = sphi 0, %s311
      %s326 = sphi 0, %s312
      %s332 = sphi 0, %s334
      %s335 = sphi 0, %s332
      %s336 = sphi 0, %s335
      %s352 = sphi 0, %s336
    $region4: #{transformer_block_forward.1} parent=1 // loop_header_branch
      %26 = sbr.rel (%p24) target = $region8
    $region5: #{transformer_block_forward.1} parent=1 // loop_body
      %s28 = ssub.s32 %s23, 1
      %s29 = ssub.s32 %s23, 2
      %s30 = sadd.s32 %s23, 1
      %s31 = ssub.s32 %s23, %s30
      %p32 = scmp.eq.s32.totalorder %s31, 0
      %s34 = sadd.s32 %s33, 1
      %s35 = scalar_select %p32, %s33, %s34
      %p38 = pneg %p32
      %p39 = scmp.eq.s32.totalorder %s23, 1
      %p40 = por %p38, %p39
      %p41 = scmp.ne.s32.totalorder %s33, %s36
      %p42 = scmp.eq.s32.totalorder %s23, 0
      %p43 = por %p41, %p42
      %p44 = scmp.ne.s32.totalorder %s33, %s36
      %p45 = scmp.eq.s32.totalorder %s28, 1
      %p46 = por %p44, %p45
      %p47 = scmp.ne.s32.totalorder %s36, %s37
      %p48 = scmp.eq.s32.totalorder %s28, 0
      %p49 = por %p47, %p48
      %p50 = scmp.ne.s32.totalorder %s36, %s37
      %p51 = scmp.eq.s32.totalorder %s29, 1
      %p52 = por %p50, %p51
      %p54 = scmp.ne.s32.totalorder %s37, %s53
      %p55 = scmp.eq.s32.totalorder %s29, 0
      %p56 = por %p54, %p55
      %s58 = sadd.s32 %s57, 1
      %p61 = scmp.eq.s32.totalorder %s23, 1
      %p62 = scmp.ne.s32.totalorder %s57, %s59
      %p63 = scmp.eq.s32.totalorder %s23, 0
      %p64 = por %p62, %p63
      %p65 = scmp.ne.s32.totalorder %s57, %s59
      %p66 = scmp.eq.s32.totalorder %s28, 1
      %p67 = por %p65, %p66
      %p68 = scmp.ne.s32.totalorder %s59, %s60
      %p69 = scmp.eq.s32.totalorder %s28, 0
      %p70 = por %p68, %p69
      %p71 = scmp.ne.s32.totalorder %s59, %s60
      %p72 = scmp.eq.s32.totalorder %s29, 1
      %p73 = por %p71, %p72
      %p75 = scmp.ne.s32.totalorder %s60, %s74
      %p76 = scmp.eq.s32.totalorder %s29, 0
      %p77 = por %p75, %p76
      %s79 = sadd.s32 %s78, 1
      %p82 = scmp.eq.s32.totalorder %s23, 1
      %p83 = scmp.ne.s32.totalorder %s78, %s80
      %p84 = scmp.eq.s32.totalorder %s23, 0
      %p85 = por %p83, %p84
      %p86 = scmp.ne.s32.totalorder %s78, %s80
      %p87 = scmp.eq.s32.totalorder %s28, 1
      %p88 = por %p86, %p87
      %p89 = scmp.ne.s32.totalorder %s80, %s81
      %p90 = scmp.eq.s32.totalorder %s28, 0
      %p91 = por %p89, %p90
      %p92 = scmp.ne.s32.totalorder %s80, %s81
      %p93 = scmp.eq.s32.totalorder %s29, 1
      %p94 = por %p92, %p93
      %p96 = scmp.ne.s32.totalorder %s81, %s95
      %p97 = scmp.eq.s32.totalorder %s29, 0
      %p98 = por %p96, %p97
      %s100 = sadd.s32 %s99, 1
      %p103 = scmp.eq.s32.totalorder %s23, 1
      %p104 = scmp.ne.s32.totalorder %s99, %s101
      %p105 = scmp.eq.s32.totalorder %s23, 0
      %p106 = por %p104, %p105
      %p107 = scmp.ne.s32.totalorder %s99, %s101
      %p108 = scmp.eq.s32.totalorder %s28, 1
      %p109 = por %p107, %p108
      %p110 = scmp.ne.s32.totalorder %s101, %s102
      %p111 = scmp.eq.s32.totalorder %s28, 0
      %p112 = por %p110, %p111
      %p113 = scmp.ne.s32.totalorder %s101, %s102
      %p114 = scmp.eq.s32.totalorder %s29, 1
      %p115 = por %p113, %p114
      %p117 = scmp.ne.s32.totalorder %s102, %s116
      %p118 = scmp.eq.s32.totalorder %s29, 0
      %p119 = por %p117, %p118
      %s121 = sadd.s32 %s120, 1
      %p124 = scmp.eq.s32.totalorder %s23, 1
      %p125 = scmp.ne.s32.totalorder %s120, %s122
      %p126 = scmp.eq.s32.totalorder %s23, 0
      %p127 = por %p125, %p126
      %p128 = scmp.ne.s32.totalorder %s120, %s122
      %p129 = scmp.eq.s32.totalorder %s28, 1
      %p130 = por %p128, %p129
      %p131 = scmp.ne.s32.totalorder %s122, %s123
      %p132 = scmp.eq.s32.totalorder %s28, 0
      %p133 = por %p131, %p132
      %p134 = scmp.ne.s32.totalorder %s122, %s123
      %p135 = scmp.eq.s32.totalorder %s29, 1
      %p136 = por %p134, %p135
      %p138 = scmp.ne.s32.totalorder %s123, %s137
      %p139 = scmp.eq.s32.totalorder %s29, 0
      %p140 = por %p138, %p139
      %s142 = sadd.s32 %s141, 1
      %p145 = scmp.eq.s32.totalorder %s23, 1
      %p146 = scmp.ne.s32.totalorder %s141, %s143
      %p147 = scmp.eq.s32.totalorder %s23, 0
      %p148 = por %p146, %p147
      %p149 = scmp.ne.s32.totalorder %s141, %s143
      %p150 = scmp.eq.s32.totalorder %s28, 1
      %p151 = por %p149, %p150
      %p152 = scmp.ne.s32.totalorder %s143, %s144
      %p153 = scmp.eq.s32.totalorder %s28, 0
      %p154 = por %p152, %p153
      %p155 = scmp.ne.s32.totalorder %s143, %s144
      %p156 = scmp.eq.s32.totalorder %s29, 1
      %p157 = por %p155, %p156
      %p159 = scmp.ne.s32.totalorder %s144, %s158
      %p160 = scmp.eq.s32.totalorder %s29, 0
      %p161 = por %p159, %p160
      %s163 = sadd.s32 %s162, 1
      %p166 = scmp.eq.s32.totalorder %s23, 1
      %p167 = scmp.ne.s32.totalorder %s162, %s164
      %p168 = scmp.eq.s32.totalorder %s23, 0
      %p169 = por %p167, %p168
      %p170 = scmp.ne.s32.totalorder %s162, %s164
      %p171 = scmp.eq.s32.totalorder %s28, 1
      %p172 = por %p170, %p171
      %p173 = scmp.ne.s32.totalorder %s164, %s165
      %p174 = scmp.eq.s32.totalorder %s28, 0
      %p175 = por %p173, %p174
      %p176 = scmp.ne.s32.totalorder %s164, %s165
      %p177 = scmp.eq.s32.totalorder %s29, 1
      %p178 = por %p176, %p177
      %p180 = scmp.ne.s32.totalorder %s165, %s179
      %p181 = scmp.eq.s32.totalorder %s29, 0
      %p182 = por %p180, %p181
      %s184 = sadd.s32 %s183, 1
      %p187 = scmp.eq.s32.totalorder %s23, 1
      %p188 = scmp.ne.s32.totalorder %s183, %s185
      %p189 = scmp.eq.s32.totalorder %s23, 0
      %p190 = por %p188, %p189
      %p191 = scmp.ne.s32.totalorder %s183, %s185
      %p192 = scmp.eq.s32.totalorder %s28, 1
      %p193 = por %p191, %p192
      %p194 = scmp.ne.s32.totalorder %s185, %s186
      %p195 = scmp.eq.s32.totalorder %s28, 0
      %p196 = por %p194, %p195
      %p197 = scmp.ne.s32.totalorder %s185, %s186
      %p198 = scmp.eq.s32.totalorder %s29, 1
      %p199 = por %p197, %p198
      %p201 = scmp.ne.s32.totalorder %s186, %s200
      %p202 = scmp.eq.s32.totalorder %s29, 0
      %p203 = por %p201, %p202
      %s205 = sadd.s32 %s204, 1
      %p208 = scmp.eq.s32.totalorder %s23, 1
      %p209 = scmp.ne.s32.totalorder %s204, %s206
      %p210 = scmp.eq.s32.totalorder %s23, 0
      %p211 = por %p209, %p210
      %p212 = scmp.ne.s32.totalorder %s204, %s206
      %p213 = scmp.eq.s32.totalorder %s28, 1
      %p214 = por %p212, %p213
      %p215 = scmp.ne.s32.totalorder %s206, %s207
      %p216 = scmp.eq.s32.totalorder %s28, 0
      %p217 = por %p215, %p216
      %p218 = scmp.ne.s32.totalorder %s206, %s207
      %p219 = scmp.eq.s32.totalorder %s29, 1
      %p220 = por %p218, %p219
      %p222 = scmp.ne.s32.totalorder %s207, %s221
      %p223 = scmp.eq.s32.totalorder %s29, 0
      %p224 = por %p222, %p223
      %s226 = sadd.s32 %s225, 1
      %p229 = scmp.eq.s32.totalorder %s23, 1
      %p230 = scmp.ne.s32.totalorder %s225, %s227
      %p231 = scmp.eq.s32.totalorder %s23, 0
      %p232 = por %p230, %p231
      %p233 = scmp.ne.s32.totalorder %s225, %s227
      %p234 = scmp.eq.s32.totalorder %s28, 1
      %p235 = por %p233, %p234
      %p236 = scmp.ne.s32.totalorder %s227, %s228
      %p237 = scmp.eq.s32.totalorder %s28, 0
      %p238 = por %p236, %p237
      %p239 = scmp.ne.s32.totalorder %s227, %s228
      %p240 = scmp.eq.s32.totalorder %s29, 1
      %p241 = por %p239, %p240
      %p243 = scmp.ne.s32.totalorder %s228, %s242
      %p244 = scmp.eq.s32.totalorder %s29, 0
      %p245 = por %p243, %p244
      %s247 = sadd.s32 %s246, 1
      %p250 = scmp.eq.s32.totalorder %s23, 1
      %p251 = scmp.ne.s32.totalorder %s246, %s248
      %p252 = scmp.eq.s32.totalorder %s23, 0
      %p253 = por %p251, %p252
      %p254 = scmp.ne.s32.totalorder %s246, %s248
      %p255 = scmp.eq.s32.totalorder %s28, 1
      %p256 = por %p254, %p255
      %p257 = scmp.ne.s32.totalorder %s248, %s249
      %p258 = scmp.eq.s32.totalorder %s28, 0
      %p259 = por %p257, %p258
      %p260 = scmp.ne.s32.totalorder %s248, %s249
      %p261 = scmp.eq.s32.totalorder %s29, 1
      %p262 = por %p260, %p261
      %p264 = scmp.ne.s32.totalorder %s249, %s263
      %p265 = scmp.eq.s32.totalorder %s29, 0
      %p266 = por %p264, %p265
      %s268 = sadd.s32 %s267, 1
      %p271 = scmp.eq.s32.totalorder %s23, 1
      %p272 = scmp.ne.s32.totalorder %s267, %s269
      %p273 = scmp.eq.s32.totalorder %s23, 0
      %p274 = por %p272, %p273
      %p275 = scmp.ne.s32.totalorder %s267, %s269
      %p276 = scmp.eq.s32.totalorder %s28, 1
      %p277 = por %p275, %p276
      %p278 = scmp.ne.s32.totalorder %s269, %s270
      %p279 = scmp.eq.s32.totalorder %s28, 0
      %p280 = por %p278, %p279
      %p281 = scmp.ne.s32.totalorder %s269, %s270
      %p282 = scmp.eq.s32.totalorder %s29, 1
      %p283 = por %p281, %p282
      %p285 = scmp.ne.s32.totalorder %s270, %s284
      %p286 = scmp.eq.s32.totalorder %s29, 0
      %p287 = por %p285, %p286
      %s289 = sadd.s32 %s288, 1
      %p292 = scmp.eq.s32.totalorder %s23, 1
      %p293 = scmp.ne.s32.totalorder %s288, %s290
      %p294 = scmp.eq.s32.totalorder %s23, 0
      %p295 = por %p293, %p294
      %p296 = scmp.ne.s32.totalorder %s288, %s290
      %p297 = scmp.eq.s32.totalorder %s28, 1
      %p298 = por %p296, %p297
      %p299 = scmp.ne.s32.totalorder %s290, %s291
      %p300 = scmp.eq.s32.totalorder %s28, 0
      %p301 = por %p299, %p300
      %p302 = scmp.ne.s32.totalorder %s290, %s291
      %p303 = scmp.eq.s32.totalorder %s29, 1
      %p304 = por %p302, %p303
      %p306 = scmp.ne.s32.totalorder %s291, %s305
      %p307 = scmp.eq.s32.totalorder %s29, 0
      %p308 = por %p306, %p307
      %s310 = sadd.s32 %s309, 1
      %p313 = scmp.eq.s32.totalorder %s23, 1
      %p314 = scmp.ne.s32.totalorder %s309, %s311
      %p315 = scmp.eq.s32.totalorder %s23, 0
      %p316 = por %p314, %p315
      %p317 = scmp.ne.s32.totalorder %s309, %s311
      %p318 = scmp.eq.s32.totalorder %s28, 1
      %p319 = por %p317, %p318
      %p320 = scmp.ne.s32.totalorder %s311, %s312
      %p321 = scmp.eq.s32.totalorder %s28, 0
      %p322 = por %p320, %p321
      %p323 = scmp.ne.s32.totalorder %s311, %s312
      %p324 = scmp.eq.s32.totalorder %s29, 1
      %p325 = por %p323, %p324
      %p327 = scmp.ne.s32.totalorder %s312, %s326
      %p328 = scmp.eq.s32.totalorder %s29, 0
      %p329 = por %p327, %p328
      %s330 = ssub.s32 %s23, %s30
      %p331 = scmp.eq.s32.totalorder %s330, 0
      %s333 = sadd.s32 %s332, 1
      %s334 = scalar_select %p331, %s332, %s333
      %p337 = pneg %p331
      %p338 = scmp.eq.s32.totalorder %s23, 1
      %p339 = por %p337, %p338
      %p340 = scmp.ne.s32.totalorder %s332, %s335
      %p341 = scmp.eq.s32.totalorder %s23, 0
      %p342 = por %p340, %p341
      %p343 = scmp.ne.s32.totalorder %s332, %s335
      %p344 = scmp.eq.s32.totalorder %s28, 1
      %p345 = por %p343, %p344
      %p346 = scmp.ne.s32.totalorder %s335, %s336
      %p347 = scmp.eq.s32.totalorder %s28, 0
      %p348 = por %p346, %p347
      %p349 = scmp.ne.s32.totalorder %s335, %s336
      %p350 = scmp.eq.s32.totalorder %s29, 1
      %p351 = por %p349, %p350
      %p353 = scmp.ne.s32.totalorder %s336, %s352
      %p354 = scmp.eq.s32.totalorder %s29, 0
      %p355 = por %p353, %p354
      %p356 = scmp.le.s32.totalorder 1, %s23
      %p357 = scmp.lt.s32.totalorder %s23, 3
      %p358 = pnand %p356, %p357
      %p359 = pneg %p358
      // Predicated region
      $region9: #{transformer_block_forward.1} parent=5 // pred_check
        _
      $region10: #{transformer_block_forward.1} parent=5 // pred_check_branch
        %361 = sbr.rel (%p358) target = $region12
      $region11: #{transformer_block_forward.1} parent=5 // pred_region
        %s362 = ssub.s32 %s23, 1
        // Predicated region
        $region13: #{transformer_block_forward.1} parent=11 // pred_check
          %p363 = pneg %p70
        $region14: #{transformer_block_forward.1} parent=11 // pred_check_branch
          %365 = sbr.rel (%p363) target = $region16
        $region15: #{transformer_block_forward.1} parent=11 // pred_region
          _
        $region16: #{transformer_block_forward.1} parent=11 // pred_fallthru
          _
        // Predicated region
        $region17: #{transformer_block_forward.1} parent=11 // pred_check
          %p366 = pneg %p91
        $region18: #{transformer_block_forward.1} parent=11 // pred_check_branch
          %368 = sbr.rel (%p366) target = $region20
        $region19: #{transformer_block_forward.1} parent=11 // pred_region
          _
        $region20: #{transformer_block_forward.1} parent=11 // pred_fallthru
          _
        // Predicated region
        $region21: #{transformer_block_forward.1} parent=11 // pred_check
          %p369 = pneg %p112
        $region22: #{transformer_block_forward.1} parent=11 // pred_check_branch
          %371 = sbr.rel (%p369) target = $region24
        $region23: #{transformer_block_forward.1} parent=11 // pred_region
          _
        $region24: #{transformer_block_forward.1} parent=11 // pred_fallthru
          _
        // Predicated region
        $region25: #{transformer_block_forward.1} parent=11 // pred_check
          %p372 = pneg %p133
        $region26: #{transformer_block_forward.1} parent=11 // pred_check_branch
          %374 = sbr.rel (%p372) target = $region28
        $region27: #{transformer_block_forward.1} parent=11 // pred_region
          _
        $region28: #{transformer_block_forward.1} parent=11 // pred_fallthru
          _
        // Predicated region
        $region29: #{transformer_block_forward.1} parent=11 // pred_check
          %p375 = pneg %p154
        $region30: #{transformer_block_forward.1} parent=11 // pred_check_branch
          %377 = sbr.rel (%p375) target = $region32
        $region31: #{transformer_block_forward.1} parent=11 // pred_region
          _
        $region32: #{transformer_block_forward.1} parent=11 // pred_fallthru
          _
        // Predicated region
        $region33: #{transformer_block_forward.1} parent=11 // pred_check
          %p378 = pneg %p175
        $region34: #{transformer_block_forward.1} parent=11 // pred_check_branch
          %380 = sbr.rel (%p378) target = $region36
        $region35: #{transformer_block_forward.1} parent=11 // pred_region
          _
        $region36: #{transformer_block_forward.1} parent=11 // pred_fallthru
          _
        // Predicated region
        $region37: #{transformer_block_forward.1} parent=11 // pred_check
          %p381 = pneg %p196
        $region38: #{transformer_block_forward.1} parent=11 // pred_check_branch
          %383 = sbr.rel (%p381) target = $region40
        $region39: #{transformer_block_forward.1} parent=11 // pred_region
          _
        $region40: #{transformer_block_forward.1} parent=11 // pred_fallthru
          _
        // Predicated region
        $region41: #{transformer_block_forward.1} parent=11 // pred_check
          %p384 = pneg %p217
        $region42: #{transformer_block_forward.1} parent=11 // pred_check_branch
          %386 = sbr.rel (%p384) target = $region44
        $region43: #{transformer_block_forward.1} parent=11 // pred_region
          _
        $region44: #{transformer_block_forward.1} parent=11 // pred_fallthru
          _
        // Predicated region
        $region45: #{transformer_block_forward.1} parent=11 // pred_check
          %p387 = pneg %p238
        $region46: #{transformer_block_forward.1} parent=11 // pred_check_branch
          %389 = sbr.rel (%p387) target = $region48
        $region47: #{transformer_block_forward.1} parent=11 // pred_region
          _
        $region48: #{transformer_block_forward.1} parent=11 // pred_fallthru
          _
        // Predicated region
        $region49: #{transformer_block_forward.1} parent=11 // pred_check
          %p390 = pneg %p259
        $region50: #{transformer_block_forward.1} parent=11 // pred_check_branch
          %392 = sbr.rel (%p390) target = $region52
        $region51: #{transformer_block_forward.1} parent=11 // pred_region
          _
        $region52: #{transformer_block_forward.1} parent=11 // pred_fallthru
          _
        // Predicated region
        $region53: #{transformer_block_forward.1} parent=11 // pred_check
          %p393 = pneg %p280
        $region54: #{transformer_block_forward.1} parent=11 // pred_check_branch
          %395 = sbr.rel (%p393) target = $region56
        $region55: #{transformer_block_forward.1} parent=11 // pred_region
          _
        $region56: #{transformer_block_forward.1} parent=11 // pred_fallthru
          _
        // Predicated region
        $region57: #{transformer_block_forward.1} parent=11 // pred_check
          %p396 = pneg %p301
        $region58: #{transformer_block_forward.1} parent=11 // pred_check_branch
          %398 = sbr.rel (%p396) target = $region60
        $region59: #{transformer_block_forward.1} parent=11 // pred_region
          _
        $region60: #{transformer_block_forward.1} parent=11 // pred_fallthru
          _
        // Predicated region
        $region61: #{transformer_block_forward.1} parent=11 // pred_check
          %p399 = pneg %p322
        $region62: #{transformer_block_forward.1} parent=11 // pred_check_branch
          %401 = sbr.rel (%p399) target = $region64
        $region63: #{transformer_block_forward.1} parent=11 // pred_region
          _
        $region64: #{transformer_block_forward.1} parent=11 // pred_fallthru
          _
      $region12: #{transformer_block_forward.1} parent=5 // pred_fallthru
        _
      %p402 = scmp.lt.s32.totalorder %s23, 2
      // Predicated region
      $region65: #{transformer_block_forward.1} parent=5 // pred_check
        %p403 = pneg %p402
      $region66: #{transformer_block_forward.1} parent=5 // pred_check_branch
        %405 = sbr.rel (%p403) target = $region68
      $region67: #{transformer_block_forward.1} parent=5 // pred_region
        // Predicated region
        $region69: #{transformer_block_forward.1} parent=67 // pred_check
          %p406 = pneg %p43
        $region70: #{transformer_block_forward.1} parent=67 // pred_check_branch
          %408 = sbr.rel (%p406) target = $region72
        $region71: #{transformer_block_forward.1} parent=67 // pred_region
          %p409 = scmp.lt.s32.totalorder %s23, 1
          %s410 = scalar_select %p409, %s23, 1
          %s411 = smul.addr %s410, 8
          %s412 = scalar_lea.vmem %s0, %s411
        $region72: #{transformer_block_forward.1} parent=67 // pred_fallthru
          _
      $region68: #{transformer_block_forward.1} parent=5 // pred_fallthru
        _
      %p413 = scmp.le.s32.totalorder 1, %s23
      %p414 = scmp.lt.s32.totalorder %s23, 3
      %p415 = pnand %p413, %p414
      %p416 = pneg %p415
      // Predicated region
      $region73: #{transformer_block_forward.1} parent=5 // pred_check
        _
      $region74: #{transformer_block_forward.1} parent=5 // pred_check_branch
        %418 = sbr.rel (%p415) target = $region76
      $region75: #{transformer_block_forward.1} parent=5 // pred_region
        %s419 = ssub.s32 %s23, 1
        %p420 = scmp.lt.s32.totalorder %s28, 1
        %s421 = scalar_select %p420, %s28, 1
        %s422 = smul.addr %s421, 8
        %s423 = scalar_lea.vmem %s0, %s422
        %p424 = pneg %p49
        %p425 = pneg %p46
        %p426 = pneg %p70
        %p427 = pneg %p67
        %p428 = pneg %p91
        %p429 = pneg %p88
        %p430 = pneg %p112
        %p431 = pneg %p109
        %p432 = pneg %p133
        %p433 = pneg %p130
        %p434 = pneg %p154
        %p435 = pneg %p151
        %p436 = pneg %p175
        %p437 = pneg %p172
        %p438 = pneg %p196
        %p439 = pneg %p193
        %p440 = pneg %p217
        %p441 = pneg %p214
        %p442 = pneg %p238
        %p443 = pneg %p235
        %p444 = pneg %p259
        %p445 = pneg %p256
        %p446 = pneg %p280
        %p447 = pneg %p277
        %p448 = pneg %p301
        %p449 = pneg %p298
        %p450 = pneg %p322
        %p451 = pneg %p319
        %p452 = pneg %p348
        %p453 = pneg %p345
        %s454 = sand.u32 %s335, 1
        %s455 = scalar_lea.sflag [#allocation3], %s454
        %s456 = sand.u32 %s335, 1
        %s457 = smul.addr %s456, 8
        %s458 = scalar_lea.vmem [#allocation2], %s457
        %p459 = scmp.lt.s32.totalorder %s28, 1
        %s460 = scalar_select %p459, %s28, 1
        %s461 = smul.addr %s460, 8
        %s462 = scalar_lea.vmem %s0, %s461
        %v464 = vld [vmem:[%s462] sm:$0xff]
        %v465 = vld [vmem:[%s4] sm:$0x1]
        %v466 = vld [vmem:[%s5] sm:$0x1]
        %vm467 = vcmask 261120
        %v468 = vsel %vm467, %v464, 0.0
        %469 = vadd.xlane.f32.xlu0 %v468
        %v470 = vpop.xlane.xlu0 %469
        %v471 = vrcp.pop 32.0
        %v472 = vmul.f32 32.0, %v471
        %v473 = vsub.f32 1.0, %v472
        %v474 = vmul.f32 %v471, %v473
        %v475 = vadd.f32 %v471, %v474
        %vm476 = vweird.f32 %v471
        %v477 = vsel %vm476, %v471, %v475
        %v478 = vmul.f32 %v470, %v477
        %v479 = vsub.f32 %v464, %v478
        %v480 = vmul.f32 %v479, %v479
        %v481 = vsel %vm467, %v480, 0.0
        %482 = vadd.xlane.f32.xlu0 %v481
        %v483 = vpop.xlane.xlu0 %482
        %v484 = vmul.f32 %v483, %v477
        %v485 = vadd.f32 %v484, 1e-05
        %v486 = vrsqrt.pop %v485
        %v487 = vmul.f32 %v486, %v485
        %v488 = vmul.f32 %v487, %v486
        %v489 = vmul.f32 0.5, %v488
        %v490 = vsub.f32 1.5, %v489
        %v491 = vmul.f32 %v486, %v490
        %vm492 = vweird.f32 %v485
        %vm493 = vweird.f32 %v486
        %vm494 = vmor %vm492, %vm493
        %v495 = vsel %vm494, %v486, %v491
        %v496 = vmul.f32 %v479, %v495
        %v498 = vperm.slane %v465, 0
        %v500 = vmul.f32 %v496, %v498
        %v502 = vperm.slane %v466, 0
        %v504 = vadd.f32 %v500, %v502
        %v505 = vpack.c.bf16 %v504, %v504
        %v506 = vld [vmem:[%s1] sm:$0xf]
        %v507 = vld [vmem:[%s1 + $0x4] sm:$0xf]
        %v508 = vld [vmem:[%s1 + $0x8] sm:$0xf]
        %v509 = vld [vmem:[%s1 + $0xc] sm:$0xf]
        %v514 = vunpack.c.l.b16 %v506
        %v515 = vunpack.c.l.b16 %v507
        %v516 = vunpack.c.l.b16 %v508
        %v517 = vunpack.c.l.b16 %v509
        %v518 = vpack.c.b16 %v515, %v514
        %v519 = vpack.c.b16 %v517, %v516
        %v523 = vsel %vm467, %v505, 0
        %525 = vmatpush.bf16.msra.mxu0 0
        %526 = vmatpush.bf16.msra.mxu0 0
        %527 = vmatpush.bf16.msra.mxu0 0
        %528 = vmatpush.bf16.msra.mxu0 0
        %529 = vmatpush.bf16.msra.mxu0 0
        %530 = vmatpush.bf16.msra.mxu0 0
        %531 = vmatpush.bf16.msra.mxu0 %v519
        %532 = vmatpush.bf16.msra.mxu0 %v518
        %533 = vmatmul.bf16.gmra.mxu0 %v523
        %v534 = vpop.f32.mrf.mxu0
        %v535 = vadd.f32 0.0, %v534
        %v536 = vpop.f32.mrf.mxu0
        %537 = vdwg.mxu0
        %v538 = vld [vmem:[%s8] sm:$0xff]
        %v539 = vld [vmem:[%s9] sm:$0xff]
        %v540 = vmul.f32 %v535, %v538
        %542 = vrot.lane.b32.xlu0 %v539, 16
        %v543 = vpop.permute.xlu0 %542
        %v545 = vmul.f32 %v535, %v543
        %547 = vrot.lane.b32.xlu0 %v545, 112
        %v548 = vpop.permute.xlu0 %547
        %v550 = vsub.f32 %v540, %v548
        %v551 = vpack.c.bf16 %v550, %v550
        %553 = vrot.lane.b32.xlu0 %v538, 16
        %v554 = vpop.permute.xlu0 %553
        %v556 = vmul.f32 %v535, %v554
        %v557 = vmul.f32 %v535, %v539
        %559 = vrot.lane.b32.xlu0 %v557, 16
        %v560 = vpop.permute.xlu0 %559
        %v562 = vadd.f32 %v556, %v560
        %v563 = vpack.c.bf16 %v562, %v562
        %564 = vrot.lane.b32.xlu0 %v538, 32
        %v565 = vpop.permute.xlu0 %564
        %v567 = vmul.f32 %v535, %v565
        %568 = vrot.lane.b32.xlu0 %v539, 48
        %v569 = vpop.permute.xlu0 %568
        %v571 = vmul.f32 %v535, %v569
        %573 = vrot.lane.b32.xlu0 %v571, 112
        %v574 = vpop.permute.xlu0 %573
        %v576 = vsub.f32 %v567, %v574
        %v577 = vpack.c.bf16 %v576, %v576
        %578 = vrot.lane.b32.xlu0 %v538, 48
        %v579 = vpop.permute.xlu0 %578
        %v581 = vmul.f32 %v535, %v579
        %582 = vrot.lane.b32.xlu0 %v539, 32
        %v583 = vpop.permute.xlu0 %582
        %v585 = vmul.f32 %v535, %v583
        %587 = vrot.lane.b32.xlu0 %v585, 16
        %v588 = vpop.permute.xlu0 %587
        %v590 = vadd.f32 %v581, %v588
        %v591 = vpack.c.bf16 %v590, %v590
        %v592 = vpack.c.bf16 %v535, %v535
        %v593 = vlaneseq
        %v594 = vshrl.u32 %v593, 7
        %v595 = vlaneseq
        %v596 = vand.u32 %v595, 127
        %vm597 = vcmp.le.s32.totalorder %v596, %v594
        %v599 = vunpack.c.l.b16 %v563
        %v600 = vpack.c.b16 %v599, %v599
        %601 = vrot.lane.b32.xlu0 %v600, 112
        %v602 = vpop.permute.xlu0 %601
        %v604 = vunpack.c.l.b16 %v591
        %v605 = vpack.c.b16 %v604, %v604
        %606 = vrot.lane.b32.xlu0 %v605, 80
        %v607 = vpop.permute.xlu0 %606
        %vm608 = vcmask 31744
        %v610 = vsel %vm608, %v602, 0
        %v613 = vsel %vm608, %v607, 0
        %615 = vmatpush.bf16.xpose.msra.mxu0 0
        %616 = vmatpush.bf16.xpose.msra.mxu0 0
        %617 = vmatpush.bf16.xpose.msra.mxu0 0
        %618 = vmatpush.bf16.xpose.msra.mxu0 0
        %619 = vmatpush.bf16.xpose.msra.mxu0 0
        %620 = vmatpush.bf16.xpose.msra.mxu0 0
        %621 = vmatpush.bf16.xpose.msra.mxu0 0
        %622 = vmatpush.bf16.xpose.msra.mxu0 %v613
        %623 = vmatmul.bf16.gmra.mxu0 %v610
        %v624 = vpop.f32.mrf.mxu0
        %v625 = vadd.f32 0.0, %v624
        %v626 = vpop.f32.mrf.mxu0
        %627 = vdwg.mxu0
        %v629 = vunpack.c.l.b16 %v577
        %v630 = vpack.c.b16 %v629, %v629
        %631 = vrot.lane.b32.xlu0 %v630, 96
        %v632 = vpop.permute.xlu0 %631
        %v634 = vsel %vm608, %v551, 0
        %v637 = vsel %vm608, %v632, 0
        %639 = vmatpush.bf16.xpose.msra.mxu0 0
        %640 = vmatpush.bf16.xpose.msra.mxu0 0
        %641 = vmatpush.bf16.xpose.msra.mxu0 0
        %642 = vmatpush.bf16.xpose.msra.mxu0 0
        %643 = vmatpush.bf16.xpose.msra.mxu0 0
        %644 = vmatpush.bf16.xpose.msra.mxu0 0
        %645 = vmatpush.bf16.xpose.msra.mxu0 0
        %646 = vmatpush.bf16.xpose.msra.mxu0 %v637
        %647 = vmatmul.bf16.gmra.mxu0 %v634
        %v648 = vpop.f32.mrf.mxu0
        %v649 = vadd.f32 %v625, %v648
        %v650 = vpop.f32.mrf.mxu0
        %651 = vdwg.mxu0
        %v652 = vsel %vm597, %v649, -1e+30
        %vm653 = vcmask 64512
        %v654 = vsel %vm653, %v652, -inf
        %655 = vmax.xlane.f32.xlu0 %v654
        %v656 = vpop.xlane.xlu0 %655
        %v657 = vsub.f32 %v652, %v656
        %v658 = vmul.f32 %v657, 1.442695
        %v659 = vpow.pop %v658
        %v660 = vsel %vm653, %v659, 0.0
        %661 = vadd.xlane.f32.xlu0 %v660
        %v662 = vpop.xlane.xlu0 %661
        %v663 = vrcp.pop %v662
        %v664 = vmul.f32 %v659, %v663
        %v665 = vpack.c.bf16 %v664, %v664
        %v667 = vunpack.c.l.b16 %v592
        %v668 = vpack.c.b16 %v667, %v667
        %669 = vrot.lane.b32.xlu0 %v668, 64
        %v670 = vpop.permute.xlu0 %669
        %v672 = vsel %vm653, %v665, 0
        %vm674 = vcmask 1043456
        %v676 = vsel %vm674, %v670, 0
        %678 = vmatpush.bf16.msra.mxu0 0
        %679 = vmatpush.bf16.msra.mxu0 0
        %680 = vmatpush.bf16.msra.mxu0 0
        %681 = vmatpush.bf16.msra.mxu0 0
        %682 = vmatpush.bf16.msra.mxu0 0
        %683 = vmatpush.bf16.msra.mxu0 0
        %684 = vmatpush.bf16.msra.mxu0 0
        %685 = vmatpush.bf16.msra.mxu0 %v676
        %686 = vmatmul.bf16.gmra.mxu0 %v672
        %v687 = vpop.f32.mrf.mxu0
        %v688 = vadd.f32 0.0, %v687
        %v689 = vpop.f32.mrf.mxu0
        %690 = vdwg.mxu0
        %v691 = vpack.c.bf16 %v688, %v688
        %v692 = vld [vmem:[%s2] sm:$0xf]
        %693 = vrot.lane.b32.xlu0 %v600, 108
        %v694 = vpop.permute.xlu0 %693
        %695 = vrot.lane.b32.xlu0 %v605, 76
        %v696 = vpop.permute.xlu0 %695
        %v698 = vsel %vm608, %v694, 0
        %v701 = vsel %vm608, %v696, 0
        %703 = vmatpush.bf16.xpose.msra.mxu0 0
        %704 = vmatpush.bf16.xpose.msra.mxu0 0
        %705 = vmatpush.bf16.xpose.msra.mxu0 0
        %706 = vmatpush.bf16.xpose.msra.mxu0 0
        %707 = vmatpush.bf16.xpose.msra.mxu0 0
        %708 = vmatpush.bf16.xpose.msra.mxu0 0
        %709 = vmatpush.bf16.xpose.msra.mxu0 0
        %710 = vmatpush.bf16.xpose.msra.mxu0 %v701
        %711 = vmatmul.bf16.gmra.mxu0 %v698
        %v712 = vpop.f32.mrf.mxu0
        %v713 = vadd.f32 0.0, %v712
        %v714 = vpop.f32.mrf.mxu0
        %715 = vdwg.mxu0
        %v717 = vunpack.c.l.b16 %v551
        %v718 = vpack.c.b16 %v717, %v717
        %719 = vrot.lane.b32.xlu0 %v718, 124
        %v720 = vpop.permute.xlu0 %719
        %721 = vrot.lane.b32.xlu0 %v630, 92
        %v722 = vpop.permute.xlu0 %721
        %v724 = vsel %vm608, %v720, 0
        %v727 = vsel %vm608, %v722, 0
        %729 = vmatpush.bf16.xpose.msra.mxu0 0
        %730 = vmatpush.bf16.xpose.msra.mxu0 0
        %731 = vmatpush.bf16.xpose.msra.mxu0 0
        %732 = vmatpush.bf16.xpose.msra.mxu0 0
        %733 = vmatpush.bf16.xpose.msra.mxu0 0
        %734 = vmatpush.bf16.xpose.msra.mxu0 0
        %735 = vmatpush.bf16.xpose.msra.mxu0 0
        %736 = vmatpush.bf16.xpose.msra.mxu0 %v727
        %737 = vmatmul.bf16.gmra.mxu0 %v724
        %v738 = vpop.f32.mrf.mxu0
        %v739 = vadd.f32 %v713, %v738
        %v740 = vpop.f32.mrf.mxu0
        %741 = vdwg.mxu0
        %v742 = vsel %vm597, %v739, -1e+30
        %v743 = vsel %vm653, %v742, -inf
        %744 = vmax.xlane.f32.xlu0 %v743
        %v745 = vpop.xlane.xlu0 %744
        %v746 = vsub.f32 %v742, %v745
        %v747 = vmul.f32 %v746, 1.442695
        %v748 = vpow.pop %v747
        %v749 = vsel %vm653, %v748, 0.0
        %750 = vadd.xlane.f32.xlu0 %v749
        %v751 = vpop.xlane.xlu0 %750
        %v752 = vrcp.pop %v751
        %v753 = vmul.f32 %v748, %v752
        %v754 = vpack.c.bf16 %v753, %v753
        %755 = vrot.lane.b32.xlu0 %v668, 56
        %v756 = vpop.permute.xlu0 %755
        %v758 = vsel %vm653, %v754, 0
        %v761 = vsel %vm674, %v756, 0
        %763 = vmatpush.bf16.msra.mxu0 0
        %764 = vmatpush.bf16.msra.mxu0 0
        %765 = vmatpush.bf16.msra.mxu0 0
        %766 = vmatpush.bf16.msra.mxu0 0
        %767 = vmatpush.bf16.msra.mxu0 0
        %768 = vmatpush.bf16.msra.mxu0 0
        %769 = vmatpush.bf16.msra.mxu0 0
        %770 = vmatpush.bf16.msra.mxu0 %v761
        %771 = vmatmul.bf16.gmra.mxu0 %v758
        %v772 = vpop.f32.mrf.mxu0
        %v773 = vadd.f32 0.0, %v772
        %v774 = vpop.f32.mrf.mxu0
        %775 = vdwg.mxu0
        %v776 = vpack.c.bf16 %v773, %v773
        %s777 = scalar_lea.vmem %s2, 4
        %v778 = vld [vmem:[%s777] sm:$0xf]
        %v780 = vsel %vm653, %v776, 0
        %v783 = vsel %vm674, %v778, 0
        %785 = vmatpush.bf16.msra.mxu0 0
        %786 = vmatpush.bf16.msra.mxu0 0
        %787 = vmatpush.bf16.msra.mxu0 0
        %788 = vmatpush.bf16.msra.mxu0 0
        %789 = vmatpush.bf16.msra.mxu0 0
        %790 = vmatpush.bf16.msra.mxu0 0
        %791 = vmatpush.bf16.msra.mxu0 0
        %792 = vmatpush.bf16.msra.mxu0 %v783
        %793 = vmatmul.bf16.gmra.mxu0 %v780
        %v794 = vpop.f32.mrf.mxu0
        %v795 = vadd.f32 0.0, %v794
        %v796 = vpop.f32.mrf.mxu0
        %797 = vdwg.mxu0
        %v799 = vsel %vm653, %v691, 0
        %v802 = vsel %vm674, %v692, 0
        %804 = vmatpush.bf16.msra.mxu0 0
        %805 = vmatpush.bf16.msra.mxu0 0
        %806 = vmatpush.bf16.msra.mxu0 0
        %807 = vmatpush.bf16.msra.mxu0 0
        %808 = vmatpush.bf16.msra.mxu0 0
        %809 = vmatpush.bf16.msra.mxu0 0
        %810 = vmatpush.bf16.msra.mxu0 0
        %811 = vmatpush.bf16.msra.mxu0 %v802
        %812 = vmatmul.bf16.gmra.mxu0 %v799
        %v813 = vpop.f32.mrf.mxu0
        %v814 = vadd.f32 %v795, %v813
        %v815 = vpop.f32.mrf.mxu0
        %816 = vdwg.mxu0
        %817 = vrot.lane.b32.xlu0 %v600, 104
        %v818 = vpop.permute.xlu0 %817
        %819 = vrot.lane.b32.xlu0 %v605, 72
        %v820 = vpop.permute.xlu0 %819
        %v822 = vsel %vm608, %v818, 0
        %v825 = vsel %vm608, %v820, 0
        %827 = vmatpush.bf16.xpose.msra.mxu0 0
        %828 = vmatpush.bf16.xpose.msra.mxu0 0
        %829 = vmatpush.bf16.xpose.msra.mxu0 0
        %830 = vmatpush.bf16.xpose.msra.mxu0 0
        %831 = vmatpush.bf16.xpose.msra.mxu0 0
        %832 = vmatpush.bf16.xpose.msra.mxu0 0
        %833 = vmatpush.bf16.xpose.msra.mxu0 0
        %834 = vmatpush.bf16.xpose.msra.mxu0 %v825
        %835 = vmatmul.bf16.gmra.mxu0 %v822
        %v836 = vpop.f32.mrf.mxu0
        %v837 = vadd.f32 0.0, %v836
        %v838 = vpop.f32.mrf.mxu0
        %839 = vdwg.mxu0
        %840 = vrot.lane.b32.xlu0 %v718, 120
        %v841 = vpop.permute.xlu0 %840
        %842 = vrot.lane.b32.xlu0 %v630, 88
        %v843 = vpop.permute.xlu0 %842
        %v845 = vsel %vm608, %v841, 0
        %v848 = vsel %vm608, %v843, 0
        %850 = vmatpush.bf16.xpose.msra.mxu0 0
        %851 = vmatpush.bf16.xpose.msra.mxu0 0
        %852 = vmatpush.bf16.xpose.msra.mxu0 0
        %853 = vmatpush.bf16.xpose.msra.mxu0 0
        %854 = vmatpush.bf16.xpose.msra.mxu0 0
        %855 = vmatpush.bf16.xpose.msra.mxu0 0
        %856 = vmatpush.bf16.xpose.msra.mxu0 0
        %857 = vmatpush.bf16.xpose.msra.mxu0 %v848
        %858 = vmatmul.bf16.gmra.mxu0 %v845
        %v859 = vpop.f32.mrf.mxu0
        %v860 = vadd.f32 %v837, %v859
        %v861 = vpop.f32.mrf.mxu0
        %862 = vdwg.mxu0
        %v863 = vsel %vm597, %v860, -1e+30
        %v864 = vsel %vm653, %v863, -inf
        %865 = vmax.xlane.f32.xlu0 %v864
        %v866 = vpop.xlane.xlu0 %865
        %v867 = vsub.f32 %v863, %v866
        %v868 = vmul.f32 %v867, 1.442695
        %v869 = vpow.pop %v868
        %v870 = vsel %vm653, %v869, 0.0
        %871 = vadd.xlane.f32.xlu0 %v870
        %v872 = vpop.xlane.xlu0 %871
        %v873 = vrcp.pop %v872
        %v874 = vmul.f32 %v869, %v873
        %v875 = vpack.c.bf16 %v874, %v874
        %876 = vrot.lane.b32.xlu0 %v668, 48
        %v877 = vpop.permute.xlu0 %876
        %v879 = vsel %vm653, %v875, 0
        %v882 = vsel %vm674, %v877, 0
        %884 = vmatpush.bf16.msra.mxu0 0
        %885 = vmatpush.bf16.msra.mxu0 0
        %886 = vmatpush.bf16.msra.mxu0 0
        %887 = vmatpush.bf16.msra.mxu0 0
        %888 = vmatpush.bf16.msra.mxu0 0
        %889 = vmatpush.bf16.msra.mxu0 0
        %890 = vmatpush.bf16.msra.mxu0 0
        %891 = vmatpush.bf16.msra.mxu0 %v882
        %892 = vmatmul.bf16.gmra.mxu0 %v879
        %v893 = vpop.f32.mrf.mxu0
        %v894 = vadd.f32 0.0, %v893
        %v895 = vpop.f32.mrf.mxu0
        %896 = vdwg.mxu0
        %v897 = vpack.c.bf16 %v894, %v894
        %s898 = scalar_lea.vmem %s2, 8
        %v899 = vld [vmem:[%s898] sm:$0xf]
        %v901 = vsel %vm653, %v897, 0
        %v904 = vsel %vm674, %v899, 0
        %906 = vmatpush.bf16.msra.mxu0 0
        %907 = vmatpush.bf16.msra.mxu0 0
        %908 = vmatpush.bf16.msra.mxu0 0
        %909 = vmatpush.bf16.msra.mxu0 0
        %910 = vmatpush.bf16.msra.mxu0 0
        %911 = vmatpush.bf16.msra.mxu0 0
        %912 = vmatpush.bf16.msra.mxu0 0
        %913 = vmatpush.bf16.msra.mxu0 %v904
        %914 = vmatmul.bf16.gmra.mxu0 %v901
        %v915 = vpop.f32.mrf.mxu0
        %v916 = vadd.f32 0.0, %v915
        %v917 = vpop.f32.mrf.mxu0
        %918 = vdwg.mxu0
        %v919 = vadd.f32 %v814, %v916
        %920 = vrot.lane.b32.xlu0 %v600, 100
        %v921 = vpop.permute.xlu0 %920
        %922 = vrot.lane.b32.xlu0 %v605, 68
        %v923 = vpop.permute.xlu0 %922
        %v925 = vsel %vm608, %v921, 0
        %v928 = vsel %vm608, %v923, 0
        %930 = vmatpush.bf16.xpose.msra.mxu0 0
        %931 = vmatpush.bf16.xpose.msra.mxu0 0
        %932 = vmatpush.bf16.xpose.msra.mxu0 0
        %933 = vmatpush.bf16.xpose.msra.mxu0 0
        %934 = vmatpush.bf16.xpose.msra.mxu0 0
        %935 = vmatpush.bf16.xpose.msra.mxu0 0
        %936 = vmatpush.bf16.xpose.msra.mxu0 0
        %937 = vmatpush.bf16.xpose.msra.mxu0 %v928
        %938 = vmatmul.bf16.gmra.mxu0 %v925
        %v939 = vpop.f32.mrf.mxu0
        %v940 = vadd.f32 0.0, %v939
        %v941 = vpop.f32.mrf.mxu0
        %942 = vdwg.mxu0
        %943 = vrot.lane.b32.xlu0 %v718, 116
        %v944 = vpop.permute.xlu0 %943
        %945 = vrot.lane.b32.xlu0 %v630, 84
        %v946 = vpop.permute.xlu0 %945
        %v948 = vsel %vm608, %v944, 0
        %v951 = vsel %vm608, %v946, 0
        %953 = vmatpush.bf16.xpose.msra.mxu0 0
        %954 = vmatpush.bf16.xpose.msra.mxu0 0
        %955 = vmatpush.bf16.xpose.msra.mxu0 0
        %956 = vmatpush.bf16.xpose.msra.mxu0 0
        %957 = vmatpush.bf16.xpose.msra.mxu0 0
        %958 = vmatpush.bf16.xpose.msra.mxu0 0
        %959 = vmatpush.bf16.xpose.msra.mxu0 0
        %960 = vmatpush.bf16.xpose.msra.mxu0 %v951
        %961 = vmatmul.bf16.gmra.mxu0 %v948
        %v962 = vpop.f32.mrf.mxu0
        %v963 = vadd.f32 %v940, %v962
        %v964 = vpop.f32.mrf.mxu0
        %965 = vdwg.mxu0
        %v966 = vsel %vm597, %v963, -1e+30
        %v967 = vsel %vm653, %v966, -inf
        %968 = vmax.xlane.f32.xlu0 %v967
        %v969 = vpop.xlane.xlu0 %968
        %v970 = vsub.f32 %v966, %v969
        %v971 = vmul.f32 %v970, 1.442695
        %v972 = vpow.pop %v971
        %v973 = vsel %vm653, %v972, 0.0
        %974 = vadd.xlane.f32.xlu0 %v973
        %v975 = vpop.xlane.xlu0 %974
        %v976 = vrcp.pop %v975
        %v977 = vmul.f32 %v972, %v976
        %v978 = vpack.c.bf16 %v977, %v977
        %979 = vrot.lane.b32.xlu0 %v668, 40
        %v980 = vpop.permute.xlu0 %979
        %v982 = vsel %vm653, %v978, 0
        %v985 = vsel %vm674, %v980, 0
        %987 = vmatpush.bf16.msra.mxu0 0
        %988 = vmatpush.bf16.msra.mxu0 0
        %989 = vmatpush.bf16.msra.mxu0 0
        %990 = vmatpush.bf16.msra.mxu0 0
        %991 = vmatpush.bf16.msra.mxu0 0
        %992 = vmatpush.bf16.msra.mxu0 0
        %993 = vmatpush.bf16.msra.mxu0 0
        %994 = vmatpush.bf16.msra.mxu0 %v985
        %995 = vmatmul.bf16.gmra.mxu0 %v982
        %v996 = vpop.f32.mrf.mxu0
        %v997 = vadd.f32 0.0, %v996
        %v998 = vpop.f32.mrf.mxu0
        %999 = vdwg.mxu0
        %v1000 = vpack.c.bf16 %v997, %v997
        %s1001 = scalar_lea.vmem %s2, 12
        %v1002 = vld [vmem:[%s1001] sm:$0xf]
        %v1004 = vsel %vm653, %v1000, 0
        %v1007 = vsel %vm674, %v1002, 0
        %1009 = vmatpush.bf16.msra.mxu0 0
        %1010 = vmatpush.bf16.msra.mxu0 0
        %1011 = vmatpush.bf16.msra.mxu0 0
        %1012 = vmatpush.bf16.msra.mxu0 0
        %1013 = vmatpush.bf16.msra.mxu0 0
        %1014 = vmatpush.bf16.msra.mxu0 0
        %1015 = vmatpush.bf16.msra.mxu0 0
        %1016 = vmatpush.bf16.msra.mxu0 %v1007
        %1017 = vmatmul.bf16.gmra.mxu0 %v1004
        %v1018 = vpop.f32.mrf.mxu0
        %v1019 = vadd.f32 0.0, %v1018
        %v1020 = vpop.f32.mrf.mxu0
        %1021 = vdwg.mxu0
        %v1022 = vadd.f32 %v919, %v1019
        %v1023 = vld [vmem:[%s3] sm:$0x1]
        %v1025 = vperm.slane %v1023, 0
        %v1027 = vadd.f32 %v1022, %v1025
        %v1028 = vadd.f32 %v464, %v1027
        %v1029 = vld [vmem:[%s6] sm:$0x1]
        %v1030 = vld [vmem:[%s7] sm:$0x1]
        %v1031 = vsel %vm467, %v1028, 0.0
        %1032 = vadd.xlane.f32.xlu0 %v1031
        %v1033 = vpop.xlane.xlu0 %1032
        %v1034 = vmul.f32 %v1033, %v477
        %v1035 = vsub.f32 %v1028, %v1034
        %v1036 = vmul.f32 %v1035, %v1035
        %v1037 = vsel %vm467, %v1036, 0.0
        %1038 = vadd.xlane.f32.xlu0 %v1037
        %v1039 = vpop.xlane.xlu0 %1038
        %v1040 = vmul.f32 %v1039, %v477
        %v1041 = vadd.f32 %v1040, 1e-05
        %v1042 = vrsqrt.pop %v1041
        %v1043 = vmul.f32 %v1042, %v1041
        %v1044 = vmul.f32 %v1043, %v1042
        %v1045 = vmul.f32 0.5, %v1044
        %v1046 = vsub.f32 1.5, %v1045
        %v1047 = vmul.f32 %v1042, %v1046
        %vm1048 = vweird.f32 %v1041
        %vm1049 = vweird.f32 %v1042
        %vm1050 = vmor %vm1048, %vm1049
        %v1051 = vsel %vm1050, %v1042, %v1047
        %v1052 = vmul.f32 %v1035, %v1051
        %v1054 = vperm.slane %v1029, 0
        %v1056 = vmul.f32 %v1052, %v1054
        %v1058 = vperm.slane %v1030, 0
        %v1060 = vadd.f32 %v1056, %v1058
        %v1061 = vpack.c.bf16 %v1060, %v1060
        %v1062 = vld [vmem:[%s10] sm:$0xf]
        %v1063 = vld [vmem:[%s10 + $0x4] sm:$0xf]
        %v1064 = vld [vmem:[%s10 + $0x8] sm:$0xf]
        %v1065 = vld [vmem:[%s10 + $0xc] sm:$0xf]
        %v1066 = vld [vmem:[%s11] sm:$0x1]
        %v1068 = vperm.slane %v1066, 0
        %v1074 = vunpack.c.l.b16 %v1062
        %v1075 = vunpack.c.l.b16 %v1063
        %v1076 = vunpack.c.l.b16 %v1064
        %v1077 = vunpack.c.l.b16 %v1065
        %v1078 = vpack.c.b16 %v1075, %v1074
        %v1079 = vpack.c.b16 %v1077, %v1076
        %v1083 = vsel %vm467, %v1061, 0
        %1085 = vmatpush.bf16.msra.mxu0 0
        %1086 = vmatpush.bf16.msra.mxu0 0
        %1087 = vmatpush.bf16.msra.mxu0 0
        %1088 = vmatpush.bf16.msra.mxu0 0
        %1089 = vmatpush.bf16.msra.mxu0 0
        %1090 = vmatpush.bf16.msra.mxu0 0
        %1091 = vmatpush.bf16.msra.mxu0 %v1079
        %1092 = vmatpush.bf16.msra.mxu0 %v1078
        %1093 = vmatmul.bf16.gmra.mxu0 %v1083
        %v1094 = vpop.f32.mrf.mxu0
        %v1095 = vadd.f32 %v1068, %v1094
        %v1096 = vpop.f32.mrf.mxu0
        %1097 = vdwg.mxu0
        %v1098 = vmul.f32 %v1095, 0.5
        %v1099 = vmul.f32 %v1095, 0.044715
        %v1100 = vmul.f32 %v1099, %v1095
        %v1101 = vmul.f32 %v1100, %v1095
        %v1102 = vadd.f32 %v1095, %v1101
        %v1103 = vmul.f32 %v1102, 0.7978846
        %v1104 = vtanh.pop %v1103
        %v1105 = vadd.f32 %v1104, 1.0
        %v1106 = vmul.f32 %v1098, %v1105
        %v1107 = vpack.c.bf16 %v1106, %v1106
        %v1108 = vld [vmem:[%s12] sm:$0xf]
        %v1109 = vld [vmem:[%s12 + $0x4] sm:$0xf]
        %v1110 = vld [vmem:[%s12 + $0x8] sm:$0xf]
        %v1111 = vld [vmem:[%s12 + $0xc] sm:$0xf]
        %v1112 = vld [vmem:[%s12 + $0x10] sm:$0xf]
        %v1113 = vld [vmem:[%s12 + $0x14] sm:$0xf]
        %v1114 = vld [vmem:[%s12 + $0x18] sm:$0xf]
        %v1115 = vld [vmem:[%s12 + $0x1c] sm:$0xf]
        %v1116 = vld [vmem:[%s12 + $0x20] sm:$0xf]
        %v1117 = vld [vmem:[%s12 + $0x24] sm:$0xf]
        %v1118 = vld [vmem:[%s12 + $0x28] sm:$0xf]
        %v1119 = vld [vmem:[%s12 + $0x2c] sm:$0xf]
        %v1120 = vld [vmem:[%s12 + $0x30] sm:$0xf]
        %v1121 = vld [vmem:[%s12 + $0x34] sm:$0xf]
        %v1122 = vld [vmem:[%s12 + $0x38] sm:$0xf]
        %v1123 = vld [vmem:[%s12 + $0x3c] sm:$0xf]
        %v1124 = vld [vmem:[%s13] sm:$0x1]
        %v1126 = vperm.slane %v1124, 0
        %v1144 = vunpack.c.l.b16 %v1108
        %v1145 = vunpack.c.l.b16 %v1109
        %v1146 = vunpack.c.l.b16 %v1110
        %v1147 = vunpack.c.l.b16 %v1111
        %v1148 = vunpack.c.l.b16 %v1112
        %v1149 = vunpack.c.l.b16 %v1113
        %v1150 = vunpack.c.l.b16 %v1114
        %v1151 = vunpack.c.l.b16 %v1115
        %v1152 = vunpack.c.l.b16 %v1116
        %v1153 = vunpack.c.l.b16 %v1117
        %v1154 = vunpack.c.l.b16 %v1118
        %v1155 = vunpack.c.l.b16 %v1119
        %v1156 = vunpack.c.l.b16 %v1120
        %v1157 = vunpack.c.l.b16 %v1121
        %v1158 = vunpack.c.l.b16 %v1122
        %v1159 = vunpack.c.l.b16 %v1123
        %v1160 = vpack.c.b16 %v1145, %v1144
        %v1161 = vpack.c.b16 %v1147, %v1146
        %v1162 = vpack.c.b16 %v1149, %v1148
        %v1163 = vpack.c.b16 %v1151, %v1150
        %v1164 = vpack.c.b16 %v1153, %v1152
        %v1165 = vpack.c.b16 %v1155, %v1154
        %v1166 = vpack.c.b16 %v1157, %v1156
        %v1167 = vpack.c.b16 %v1159, %v1158
        %1176 = vmatpush.bf16.msra.mxu0 %v1167
        %1177 = vmatpush.bf16.msra.mxu0 %v1166
        %1178 = vmatpush.bf16.msra.mxu0 %v1165
        %1179 = vmatpush.bf16.msra.mxu0 %v1164
        %1180 = vmatpush.bf16.msra.mxu0 %v1163
        %1181 = vmatpush.bf16.msra.mxu0 %v1162
        %1182 = vmatpush.bf16.msra.mxu0 %v1161
        %1183 = vmatpush.bf16.msra.mxu0 %v1160
        %1184 = vmatmul.bf16.gmra.mxu0 %v1107
        %v1185 = vpop.f32.mrf.mxu0
        %v1186 = vadd.f32 %v1126, %v1185
        %v1187 = vpop.f32.mrf.mxu0
        %1188 = vdwg.mxu0
        %v1189 = vadd.f32 %v1028, %v1186
        %1190 = vst.msk [vmem:[%s458] sm:$0xff] %vm467, %v1189
        %s1191 = sand.u32 %s335, 1
        %s1192 = scalar_lea.sflag [#allocation3], %s1191
        %s1193 = sand.u32 %s335, 1
        %s1194 = smul.addr %s1193, 8
        %s1195 = scalar_lea.vmem [#allocation2], %s1194
        // Predicated region
        $region77: #{transformer_block_forward.1} parent=75 // pred_check
          %p1196 = pneg %p345
        $region78: #{transformer_block_forward.1} parent=75 // pred_check_branch
          %1198 = sbr.rel (%p1196) target = $region80
        $region79: #{transformer_block_forward.1} parent=75 // pred_region
          %1200 = vsyncadd %s1192, 0
          %s1201 = smul.addr %s28, 8
          %s1202 = scalar_lea.hbm %s14, %s1201
          %s1204 = sshll.u32 %s1195, 4
          %s1205 = int_to_ptr.vmem [resolvable:$true] %s1204
          %s1206 = sshll.u32 %s1202, 4
          %s1207 = int_to_ptr.hbm [resolvable:$true] %s1206
          %1209 = dma.vmem_to_hbm [thread:$0]  %s1205, 128, %s1207, %s1192
        $region80: #{transformer_block_forward.1} parent=75 // pred_fallthru
          _
      $region76: #{transformer_block_forward.1} parent=5 // pred_fallthru
        _
      %p1210 = scmp.le.s32.totalorder 2, %s23
      // Predicated region
      $region81: #{transformer_block_forward.1} parent=5 // pred_check
        %p1211 = pneg %p1210
      $region82: #{transformer_block_forward.1} parent=5 // pred_check_branch
        %1213 = sbr.rel (%p1211) target = $region84
      $region83: #{transformer_block_forward.1} parent=5 // pred_region
        %s1214 = ssub.s32 %s23, 2
        // Predicated region
        $region85: #{transformer_block_forward.1} parent=83 // pred_check
          %p1215 = pneg %p351
        $region86: #{transformer_block_forward.1} parent=83 // pred_check_branch
          %1217 = sbr.rel (%p1215) target = $region88
        $region87: #{transformer_block_forward.1} parent=83 // pred_region
          %s1218 = sand.u32 %s336, 1
          %s1219 = scalar_lea.sflag [#allocation3], %s1218
          %s1220 = sand.u32 %s336, 1
          %s1221 = smul.addr %s1220, 8
          %s1222 = scalar_lea.vmem [#allocation2], %s1221
          %1224 = dma.done %s1219, 128
        $region88: #{transformer_block_forward.1} parent=83 // pred_fallthru
          _
      $region84: #{transformer_block_forward.1} parent=5 // pred_fallthru
        _
    $region6: #{transformer_block_forward.1} parent=1 // loop_footer
      %s27 = sadd.s32 1, %s23
    $region7: #{transformer_block_forward.1} parent=1 // loop_footer_branch
      %22 = sbr.rel target = $region3
    $region8: #{transformer_block_forward.1} parent=1 // loop_exit
      _
    %1225 = vsyncpa [#allocation3], 1
    %s1226 = scalar_lea.sflag [#allocation3], 1
    %1227 = vsyncpa %s1226, 1

</llo_original>
